<compile_context>
chip_gen: v7x
topology: tpu7x:2x2x1
jax: 0.10.0
libtpu: 0.0.40
codegen_flags: <defaults>
</compile_context>

<pallas_src>
import functools

import jax
import jax.numpy as jnp
from jax import lax
from jax.experimental import pallas as pl
from jax.experimental.pallas import tpu as pltpu


def _sage_kernel(x_hi_ref, x_lo_ref, adj_ref, w_ref, b_ref, o_ref,
                 acc_ref, deg_ref, *, apply_l2, resident_x, tk):
    k = pl.program_id(2)

    @pl.when(k == 0)
    def _init():
        acc_ref[...] = jnp.zeros_like(acc_ref)
        deg_ref[...] = jnp.zeros_like(deg_ref)

    adj = adj_ref[0]                                        # (TM, TK) bf16

    if resident_x:
        # x is resident per batch; slice the reduction chunk for this k step.
        off = pl.multiple_of(k * tk, 128)
        x_hi = x_hi_ref[0, pl.ds(off, tk), :]               # (TK, F_in_p) bf16
        x_lo = x_lo_ref[0, pl.ds(off, tk), :]
    else:
        x_hi = x_hi_ref[0]
        x_lo = x_lo_ref[0]

    # bf16 x bf16 MXU matmuls with f32 accumulation.  The hi/lo split of x
    # keeps adj @ x accurate to ~f32 while staying on the fast MXU path.
    acc_ref[...] += (
        jnp.dot(adj, x_hi, preferred_element_type=jnp.float32)
        + jnp.dot(adj, x_lo, preferred_element_type=jnp.float32))
    # 0/1 adjacency values are bf16-exact; f32-accumulating sum -> exact degree.
    deg_ref[...] += jnp.sum(adj, axis=-1, keepdims=True, dtype=jnp.float32)

    @pl.when(k == pl.num_programs(2) - 1)
    def _finalize():
        # Row scaling by 1/deg commutes with the W matmul, so apply it after:
        # TM*F_out scalings instead of TM*F_in, and a single (TM, 1) reciprocal.
        t = jnp.dot(acc_ref[...], w_ref[...], preferred_element_type=jnp.float32)
        inv_deg = 1.0 / deg_ref[...]      # no clamp: matches the reference module
        out = t * inv_deg + b_ref[...]
        if apply_l2:
            # Padded F_out columns are exactly zero (zero-padded W & b), so they
            # do not perturb the L2 norm.  rsqrt + multiply instead of sqrt+div.
            sumsq = jnp.sum(out * out, axis=-1, keepdims=True)
            out = out * lax.rsqrt(jnp.maximum(sumsq, 1e-24))
        o_ref[0] = out.astype(o_ref.dtype)


def _round_up(v, m):
    return ((v + m - 1) // m) * m


def _pick_tile(n_padded, target, align=128):
    """Largest multiple of `align` <= min(target, n_padded) dividing n_padded.

    `n_padded` must itself be a multiple of `align`, so the search always
    terminates (at `align` in the worst case).
    """
    t = max((min(target, n_padded) // align) * align, align)
    while n_padded % t != 0:
        t -= align
    return t


def _vmem_limit_bytes(need_bytes):
    try:
        cap = pltpu.get_tpu_info().vmem_capacity_bytes
    except Exception:
        cap = 64 * 1024 * 1024
    # Actual double-buffered footprint + headroom for compiler-internal scratch,
    # floored at the usual 32 MiB scoped default, capped below physical VMEM.
    want = max(32 * 1024 * 1024, int(need_bytes * 1.5) + (4 << 20))
    return int(min(want, (cap * 9) // 10))


def dense_sage_conv(x, adj, weight, bias=None, *, normalize=True,
                    tm_target=512, tk_target=1024,
                    resident_x_budget_bytes=16 * 1024 * 1024):
    """DenseSAGEConv forward.

    x: (B, N, F_in) or (N, F_in); adj: (B, N, N) or (N, N);
    weight: (F_in, F_out); bias: (F_out,) or None.
    """
    if x.ndim == 2:
        x = x[None]
    if adj.ndim == 2:
        adj = adj[None]
    out_dtype = x.dtype

    B, N, F_in = x.shape
    F_out = weight.shape[1]

    # --- pad to TPU-friendly extents (all zero padding) -----------------------
    N_p = _round_up(N, 128)
    F_in_p = _round_up(F_in, 128)
    F_out_p = _round_up(F_out, 128)

    x32 = x.astype(jnp.float32)
    if (N_p, F_in_p) != (N, F_in):
        x32 = jnp.pad(x32, ((0, 0), (0, N_p - N), (0, F_in_p - F_in)))
    # bf16 hi/lo split of x: adj @ x == adj @ x_hi + adj @ x_lo to ~f32 accuracy,
    # with both matmuls on the bf16 MXU fast path.
    x_hi = x32.astype(jnp.bfloat16)
    x_lo = (x32 - x_hi.astype(jnp.float32)).astype(jnp.bfloat16)

    adj_in = adj.astype(jnp.bfloat16)          # exact for 0/1 adjacency
    if N_p != N:
        adj_in = jnp.pad(adj_in, ((0, 0), (0, N_p - N), (0, N_p - N)))

    w = weight.astype(jnp.float32)
    b = (bias if bias is not None
         else jnp.zeros((F_out,), jnp.float32)).astype(jnp.float32)
    if F_out_p != F_out or F_in_p != F_in:
        w = jnp.pad(w, ((0, F_in_p - F_in), (0, F_out_p - F_out)))
        b = jnp.pad(b, (0, F_out_p - F_out))
    b2d = b.reshape(1, F_out_p)

    # --- tiling ----------------------------------------------------------------
    TM = _pick_tile(N_p, tm_target)
    if B == 1 and N_p // TM < 2 and N_p >= 256:
        # Keep >= 2 parallel row tiles so both v7x TensorCores get work.
        TM = _pick_tile(N_p, N_p // 2)
    TK = _pick_tile(N_p, tk_target)
    grid = (B, N_p // TM, N_p // TK)

    # x resident per batch if (hi + lo, double-buffered) fits the budget,
    # otherwise stream (TK, F_in) chunks (re-fetched once per row tile).
    resident_bytes = 2 * 2 * N_p * F_in_p * 2
    resident_x = resident_bytes <= resident_x_budget_bytes
    if resident_x:
        x_spec = pl.BlockSpec((1, N_p, F_in_p), lambda bb, i, k: (bb, 0, 0))
        x_bytes = resident_bytes
    else:
        x_spec = pl.BlockSpec((1, TK, F_in_p), lambda bb, i, k: (bb, k, 0))
        x_bytes = 2 * 2 * TK * F_in_p * 2

    need = (2 * TM * TK * 2                                      # adj (bf16, x2 buf)
            + x_bytes                                            # x hi + lo
            + 2 * TM * F_out_p * jnp.dtype(out_dtype).itemsize   # out
            + 2 * F_in_p * F_out_p * 4                           # W
            + 2 * 8 * F_out_p * 4                                # b (sublane-padded)
            + TM * F_in_p * 4                                    # acc scratch
            + TM * 128 * 4)                                      # deg scratch (lane-padded)

    kernel = functools.partial(_sage_kernel, apply_l2=normalize,
                               resident_x=resident_x, tk=TK)

    out = pl.pallas_call(
        kernel,
        out_shape=jax.ShapeDtypeStruct((B, N_p, F_out_p), out_dtype),
        grid_spec=pltpu.PrefetchScalarGridSpec(
            num_scalar_prefetch=0,
            grid=grid,
            in_specs=[
                x_spec,                                                     # x_hi
                x_spec,                                                     # x_lo
                pl.BlockSpec((1, TM, TK), lambda bb, i, k: (bb, i, k)),     # adj
                pl.BlockSpec((F_in_p, F_out_p), lambda bb, i, k: (0, 0)),   # W
                pl.BlockSpec((1, F_out_p), lambda bb, i, k: (0, 0)),        # b
            ],
            out_specs=pl.BlockSpec((1, TM, F_out_p), lambda bb, i, k: (bb, i, 0)),
            scratch_shapes=[
                pltpu.VMEM((TM, F_in_p), jnp.float32),   # (adj @ x) accumulator
                pltpu.VMEM((TM, 1), jnp.float32),        # degree accumulator
            ],
        ),
        compiler_params=pltpu.CompilerParams(
            dimension_semantics=("parallel", "parallel", "arbitrary"),
            vmem_limit_bytes=_vmem_limit_bytes(need),
        ),
    )(x_hi, x_lo, adj_in, w, b2d)

    # Slice off N / F_out padding (padded rows are garbage by design: deg == 0).
    return out[:, :N, :F_out]


def _reference(x, adj, weight, bias, *, normalize=True):
    # Pure-JAX reference mirroring the PyTorch forward (high-precision matmuls).
    hp = lax.Precision.HIGHEST
    out = jnp.matmul(adj, x, precision=hp)
    out = out / jnp.sum(adj, axis=-1, keepdims=True)
    out = jnp.matmul(out, weight, precision=hp)
    if bias is not None:
        out = out + bias
    if normalize:
        norm = jnp.maximum(jnp.linalg.norm(out, axis=-1, keepdims=True), 1e-12)
        out = out / norm
    return out


def _run_case(key, B, N, F_in, F_out, **kw):
    kx, kadj, kwt, kb = jax.random.split(key, 4)
    x = jax.random.normal(kx, (B, N, F_in), dtype=jnp.float32)
    # Random binary adjacency with self-loops so every row-sum is > 0.
    adj = (jax.random.uniform(kadj, (B, N, N)) > 0.5).astype(jnp.float32)
    adj = jnp.maximum(adj, jnp.eye(N, dtype=jnp.float32)[None])

    # torch_geometric's `uniform(in_channels, ...)`: U(-1/sqrt(F_in), 1/sqrt(F_in)).
    bound = 1.0 / (F_in ** 0.5)
    weight = jax.random.uniform(kwt, (F_in, F_out), minval=-bound, maxval=bound,
                                dtype=jnp.float32)
    bias = jax.random.uniform(kb, (F_out,), minval=-bound, maxval=bound,
                              dtype=jnp.float32)

    out = dense_sage_conv(x, adj, weight, bias, **kw)
    out = jax.block_until_ready(out)
    assert out.shape == (B, N, F_out)

    ref = _reference(x, adj, weight, bias)
    err = float(jnp.max(jnp.abs(out - ref)))
    assert jnp.allclose(out, ref, atol=2e-4, rtol=2e-4), (
        f"mismatch vs reference (max abs err {err})")
    return err


if __name__ == "__main__":
    key = jax.random.PRNGKey(0)
    k1, k2, k3 = jax.random.split(key, 3)

    # Small case: everything padded up to a single (128, 128) tile.
    _run_case(k1, B=2, N=16, F_in=32, F_out=32)
    # Tiled + accumulating path: grid (2, 3, 3), resident x sliced per k-step.
    _run_case(k2, B=2, N=768, F_in=128, F_out=64, tm_target=256, tk_target=256)
    # Awkward extents: N / F_in / F_out all padded, B == 1 megacore TM split.
    _run_case(k3, B=1, N=600, F_in=100, F_out=48)

    print("KERNEL_OK")
</pallas_src>

<mosaic_0001>
module attributes {stable_mosaic.version = 11 : i64} {
  func.func @_sage_kernel(%arg0: i32, %arg1: i32, %arg2: i32, %arg3: memref<1x128x128xbf16, #tpu.memory_space<vmem>>, %arg4: memref<1x128x128xbf16, #tpu.memory_space<vmem>>, %arg5: memref<1x128x128xbf16, #tpu.memory_space<vmem>>, %arg6: memref<128x128xf32, #tpu.memory_space<vmem>>, %arg7: memref<1x128xf32, #tpu.memory_space<vmem>>, %arg8: memref<1x128x128xf32, #tpu.memory_space<vmem>>, %arg9: memref<128x128xf32, #tpu.memory_space<vmem>>, %arg10: memref<128x1xf32, #tpu.memory_space<vmem>>) attributes {dimension_semantics = [#tpu.dimension_semantics<parallel>, #tpu.dimension_semantics<parallel>, #tpu.dimension_semantics<arbitrary>], iteration_bounds = array<i64: 2, 1, 1>, scalar_prefetch = 0 : i64, scratch_operands = 2 : i64, tpu.core_type = #tpu.core_type<tc>, window_params = [{transform_indices = @transform_0, window_bounds = array<i64: 1, 128, 128>}, {transform_indices = @transform_1, window_bounds = array<i64: 1, 128, 128>}, {transform_indices = @transform_2, window_bounds = array<i64: 1, 128, 128>}, {pipeline_mode = #tpu.pipeline_mode<synchronous>, transform_indices = @transform_3, window_bounds = array<i64: 128, 128>}, {pipeline_mode = #tpu.pipeline_mode<synchronous>, transform_indices = @transform_4, window_bounds = array<i64: 1, 128>}, {transform_indices = @transform_5, window_bounds = array<i64: 1, 128, 128>}]} {
    %c0_i32 = arith.constant 0 : i32
    %0 = arith.cmpi eq, %arg2, %c0_i32 : i32
    %1 = arith.extui %0 : i1 to i32
    %c0_i32_0 = arith.constant 0 : i32
    %2 = arith.cmpi ne, %1, %c0_i32_0 : i32
    scf.if %2 {
      %cst_19 = arith.constant 0.000000e+00 : f32
      %28 = vector.broadcast %cst_19 : f32 to vector<128x128xf32>
      %c0_20 = arith.constant 0 : index
      %c0_21 = arith.constant 0 : index
      %29 = vector.load %arg9[%c0_20, %c0_21] : memref<128x128xf32, #tpu.memory_space<vmem>>, vector<128x128xf32>
      tpu.vector_store %arg9[%c0_20, %c0_21], %28 {strides = array<i32>} : memref<128x128xf32, #tpu.memory_space<vmem>>, vector<128x128xf32>,
      %cst_22 = arith.constant 0.000000e+00 : f32
      %30 = vector.broadcast %cst_22 : f32 to vector<128x1xf32>
      %c0_23 = arith.constant 0 : index
      %c0_24 = arith.constant 0 : index
      %31 = vector.load %arg10[%c0_23, %c0_24] : memref<128x1xf32, #tpu.memory_space<vmem>>, vector<128x1xf32>
      tpu.vector_store %arg10[%c0_23, %c0_24], %30 {strides = array<i32>} : memref<128x1xf32, #tpu.memory_space<vmem>>, vector<128x1xf32>,
    } else {
    }
    %c0 = arith.constant 0 : index
    %c0_1 = arith.constant 0 : index
    %c0_2 = arith.constant 0 : index
    %3 = vector.load %arg5[%c0, %c0_1, %c0_2] : memref<1x128x128xbf16, #tpu.memory_space<vmem>>, vector<1x128x128xbf16>
    %4 = vector.shape_cast %3 : vector<1x128x128xbf16> to vector<128x128xbf16>
    %c128_i32 = arith.constant 128 : i32
    %5 = arith.muli %arg2, %c128_i32 : i32
    %6 = tpu.assume_multiple %5, 128 : i32
    %c0_3 = arith.constant 0 : index
    %7 = arith.index_cast %6 : i32 to index
    %c0_4 = arith.constant 0 : index
    %8 = vector.load %arg3[%c0_3, %7, %c0_4] : memref<1x128x128xbf16, #tpu.memory_space<vmem>>, vector<1x128x128xbf16>
    %9 = vector.shape_cast %8 : vector<1x128x128xbf16> to vector<128x128xbf16>
    %c0_5 = arith.constant 0 : index
    %10 = arith.index_cast %6 : i32 to index
    %c0_6 = arith.constant 0 : index
    %11 = vector.load %arg4[%c0_5, %10, %c0_6] : memref<1x128x128xbf16, #tpu.memory_space<vmem>>, vector<1x128x128xbf16>
    %12 = vector.shape_cast %11 : vector<1x128x128xbf16> to vector<128x128xbf16>
    %c0_7 = arith.constant 0 : index
    %c0_8 = arith.constant 0 : index
    %13 = vector.load %arg9[%c0_7, %c0_8] : memref<128x128xf32, #tpu.memory_space<vmem>>, vector<128x128xf32>
    %cst = arith.constant dense<0.000000e+00> : vector<128x128xf32>
    %14 = tpu.matmul %4, %9, %cst {dimension_numbers = #tpu.dot_dimension_numbers<[1], [0], [0], [1], [0, 0, 1, 1], [], []>} : vector<128x128xbf16>, vector<128x128xbf16>, vector<128x128xf32> -> vector<128x128xf32>
    %cst_9 = arith.constant dense<0.000000e+00> : vector<128x128xf32>
    %15 = tpu.matmul %4, %12, %cst_9 {dimension_numbers = #tpu.dot_dimension_numbers<[1], [0], [0], [1], [0, 0, 1, 1], [], []>} : vector<128x128xbf16>, vector<128x128xbf16>, vector<128x128xf32> -> vector<128x128xf32>
    %16 = arith.addf %14, %15 : vector<128x128xf32>
    %17 = arith.addf %13, %16 : vector<128x128xf32>
    %c0_10 = arith.constant 0 : index
    %c0_11 = arith.constant 0 : index
    %18 = vector.load %arg9[%c0_10, %c0_11] : memref<128x128xf32, #tpu.memory_space<vmem>>, vector<128x128xf32>
    tpu.vector_store %arg9[%c0_10, %c0_11], %17 {strides = array<i32>} : memref<128x128xf32, #tpu.memory_space<vmem>>, vector<128x128xf32>,
    %c0_12 = arith.constant 0 : index
    %c0_13 = arith.constant 0 : index
    %19 = vector.load %arg10[%c0_12, %c0_13] : memref<128x1xf32, #tpu.memory_space<vmem>>, vector<128x1xf32>
    %20 = arith.extf %4 : vector<128x128xbf16> to vector<128x128xf32>
    %cst_14 = arith.constant dense<0.000000e+00> : vector<128xf32>
    %21 = vector.multi_reduction <add>, %20, %cst_14 [1] : vector<128x128xf32> to vector<128xf32>
    %22 = vector.shape_cast %21 : vector<128xf32> to vector<128x1xf32>
    %23 = arith.addf %19, %22 : vector<128x1xf32>
    %c0_15 = arith.constant 0 : index
    %c0_16 = arith.constant 0 : index
    %24 = vector.load %arg10[%c0_15, %c0_16] : memref<128x1xf32, #tpu.memory_space<vmem>>, vector<128x1xf32>
    tpu.vector_store %arg10[%c0_15, %c0_16], %23 {strides = array<i32>} : memref<128x1xf32, #tpu.memory_space<vmem>>, vector<128x1xf32>,
    %c0_i32_17 = arith.constant 0 : i32
    %25 = arith.cmpi eq, %arg2, %c0_i32_17 : i32
    %26 = arith.extui %25 : i1 to i32
    %c0_i32_18 = arith.constant 0 : i32
    %27 = arith.cmpi ne, %26, %c0_i32_18 : i32
    scf.if %27 {
      %c0_19 = arith.constant 0 : index
      %c0_20 = arith.constant 0 : index
      %28 = vector.load %arg9[%c0_19, %c0_20] : memref<128x128xf32, #tpu.memory_space<vmem>>, vector<128x128xf32>
      %c0_21 = arith.constant 0 : index
      %c0_22 = arith.constant 0 : index
      %29 = vector.load %arg6[%c0_21, %c0_22] : memref<128x128xf32, #tpu.memory_space<vmem>>, vector<128x128xf32>
      %cst_23 = arith.constant dense<0.000000e+00> : vector<128x128xf32>
      %30 = tpu.matmul %28, %29, %cst_23 {dimension_numbers = #tpu.dot_dimension_numbers<[1], [0], [0], [1], [0, 0, 1, 1], [], []>} : vector<128x128xf32>, vector<128x128xf32>, vector<128x128xf32> -> vector<128x128xf32>
      %c0_24 = arith.constant 0 : index
      %c0_25 = arith.constant 0 : index
      %31 = vector.load %arg10[%c0_24, %c0_25] : memref<128x1xf32, #tpu.memory_space<vmem>>, vector<128x1xf32>
      %cst_26 = arith.constant 1.000000e+00 : f32
      %32 = vector.broadcast %cst_26 : f32 to vector<128x1xf32>
      %33 = arith.divf %32, %31 : vector<128x1xf32>
      %34 = vector.broadcast %33 : vector<128x1xf32> to vector<128x128xf32>
      %35 = arith.mulf %30, %34 : vector<128x128xf32>
      %c0_27 = arith.constant 0 : index
      %c0_28 = arith.constant 0 : index
      %36 = vector.load %arg7[%c0_27, %c0_28] : memref<1x128xf32, #tpu.memory_space<vmem>>, vector<1x128xf32>
      %37 = vector.broadcast %36 : vector<1x128xf32> to vector<128x128xf32>
      %38 = arith.addf %35, %37 : vector<128x128xf32>
      %39 = arith.mulf %38, %38 : vector<128x128xf32>
      %cst_29 = arith.constant dense<0.000000e+00> : vector<128xf32>
      %40 = vector.multi_reduction <add>, %39, %cst_29 [1] : vector<128x128xf32> to vector<128xf32>
      %41 = vector.shape_cast %40 : vector<128xf32> to vector<128x1xf32>
      %cst_30 = arith.constant 1.000000e-24 : f32
      %42 = vector.broadcast %cst_30 : f32 to vector<128x1xf32>
      %43 = arith.maximumf %41, %42 : vector<128x1xf32>
      %44 = math.rsqrt %43 : vector<128x1xf32>
      %45 = vector.broadcast %44 : vector<128x1xf32> to vector<128x128xf32>
      %46 = arith.mulf %38, %45 : vector<128x128xf32>
      %c0_31 = arith.constant 0 : index
      %c0_32 = arith.constant 0 : index
      %c0_33 = arith.constant 0 : index
      %47 = vector.load %arg8[%c0_31, %c0_32, %c0_33] : memref<1x128x128xf32, #tpu.memory_space<vmem>>, vector<1x128x128xf32>
      %48 = vector.shape_cast %47 : vector<1x128x128xf32> to vector<128x128xf32>
      %49 = vector.shape_cast %46 : vector<128x128xf32> to vector<1x128x128xf32>
      tpu.vector_store %arg8[%c0_31, %c0_32, %c0_33], %49 {strides = array<i32>} : memref<1x128x128xf32, #tpu.memory_space<vmem>>, vector<1x128x128xf32>,
    } else {
    }
    return
  }
  func.func @transform_0(%arg0: i32, %arg1: i32, %arg2: i32) -> (i32, i32, i32) {
    %c0_i32 = arith.constant 0 : i32
    %c0_i32_0 = arith.constant 0 : i32
    %c0_i32_1 = arith.constant 0 : i32
    return %arg0, %c0_i32, %c0_i32_0 : i32, i32, i32
  }
  func.func @transform_1(%arg0: i32, %arg1: i32, %arg2: i32) -> (i32, i32, i32) {
    %c0_i32 = arith.constant 0 : i32
    %c0_i32_0 = arith.constant 0 : i32
    %c0_i32_1 = arith.constant 0 : i32
    return %arg0, %c0_i32, %c0_i32_0 : i32, i32, i32
  }
  func.func @transform_2(%arg0: i32, %arg1: i32, %arg2: i32) -> (i32, i32, i32) {
    %c0_i32 = arith.constant 0 : i32
    return %arg0, %arg1, %arg2 : i32, i32, i32
  }
  func.func @transform_3(%arg0: i32, %arg1: i32, %arg2: i32) -> (i32, i32) {
    %c0_i32 = arith.constant 0 : i32
    %c0_i32_0 = arith.constant 0 : i32
    %c0_i32_1 = arith.constant 0 : i32
    return %c0_i32, %c0_i32_0 : i32, i32
  }
  func.func @transform_4(%arg0: i32, %arg1: i32, %arg2: i32) -> (i32, i32) {
    %c0_i32 = arith.constant 0 : i32
    %c0_i32_0 = arith.constant 0 : i32
    %c0_i32_1 = arith.constant 0 : i32
    return %c0_i32, %c0_i32_0 : i32, i32
  }
  func.func @transform_5(%arg0: i32, %arg1: i32, %arg2: i32) -> (i32, i32, i32) {
    %c0_i32 = arith.constant 0 : i32
    %c0_i32_0 = arith.constant 0 : i32
    return %arg0, %arg1, %c0_i32 : i32, i32, i32
  }
}

</mosaic_0001>

<llo_original>
// kernel: tpu_custom_call.1
$region0: #{tpu_custom_call.1}
  #allocation0 [shape = 'u32[]', space=smem, size = 0x4, offset = 0x4, fixed_abs, tag = 'smem constant byte address 0x4 - core index']
  #allocation1 [shape = 'u32[144,128]{1,0:T(1,128)}', space=vmem, size = 0x12000, scoped, tag = 'internal scratch']
  #allocation2 [shape = 'f32[128,128]{1,0:T(8,128)}', space=vmem, size = 0x10000, scoped, tag = 'scratch operand']
  #allocation3 [shape = 'f32[128,1]{1,0:T(8,128)}', space=vmem, size = 0x10000, scoped, tag = 'scratch operand']
  %s0 = inlined_call_operand.hbm [shape: bf16[2,128,128], index: 0, kind: input, shape index: {}]
  %s1 = inlined_call_operand.hbm [shape: bf16[2,128,128], index: 1, kind: input, shape index: {}]
  %s2 = inlined_call_operand.hbm [shape: bf16[2,128,128], index: 2, kind: input, shape index: {}]
  %s3 = inlined_call_operand.hbm [shape: f32[128,128], index: 3, kind: input, shape index: {}]
  %s4 = inlined_call_operand.vmem [shape: f32[1,128], index: 4, kind: input, shape index: {}]
  %s5 = inlined_call_operand.hbm [shape: f32[2,128,128], index: 5, kind: output, shape index: {}]
  %s6 = sld [smem:[#allocation0]]
  $region77: #{tpu_custom_call.1} parent=0
    _
  %s8 = ssub.s32 1, %s6
  %s9 = scalar_select 0, %s8, %s6
  $region1: #{tpu_custom_call.1} parent=0
    #allocation4 [shape = 'u8[65536]{0}', space=vmem, size = 0x10000, scoped, tag = 'input window, operand 0']
    #allocation5 [shape = 's32[2]{0}', space=sflag, size = 0x8, scoped, tag = 'scoped memory for tpu_custom_call.1']
    #allocation6 [shape = 's32[2]{0}', space=sflag, size = 0x8, scoped, tag = 'scoped memory for tpu_custom_call.1']
    #allocation7 [shape = 'u8[65536]{0}', space=vmem, size = 0x10000, scoped, tag = 'input window, operand 1']
    #allocation8 [shape = 's32[2]{0}', space=sflag, size = 0x8, scoped, tag = 'scoped memory for tpu_custom_call.1']
    #allocation9 [shape = 'u8[65536]{0}', space=vmem, size = 0x10000, scoped, tag = 'input window, operand 2']
    #allocation10 [shape = 'u8[65536]{0}', space=vmem, size = 0x10000, scoped, tag = 'input window, operand 3, single buffered']
    #allocation11 [shape = 's32[1]{0}', space=sflag, size = 0x4, scoped, tag = 'scoped memory for tpu_custom_call.1']
    #allocation12 [shape = 'u8[131072]{0}', space=vmem, size = 0x20000, scoped, tag = 'output window, operand 0']
    %10 = vsyncpa [#allocation5], 0
    %s11 = scalar_lea.sflag [#allocation5], 1
    %12 = vsyncpa %s11, 0
    %13 = vsyncpa [#allocation8], 0
    %s14 = scalar_lea.sflag [#allocation8], 1
    %15 = vsyncpa %s14, 0
    %16 = vsyncpa [#allocation11], 0
    %17 = vsyncpa [#allocation6], 0
    %s18 = scalar_lea.sflag [#allocation6], 1
    %19 = vsyncpa %s18, 0
    loop: start=0, step=1, limit=4
    $region2: #{tpu_custom_call.1} parent=1 // loop_pre_header
      _
    $region3: #{tpu_custom_call.1} parent=1 // loop_header
      %s21 = sphi 0, %s25
      %p22 = scmp.ge.s32.totalorder %s21, 4
      %s28 = sphi 0, %s47
      %s29 = sphi 0, %s43
      %s30 = sphi 0, %s39
      %s31 = sphi 0, %s28
      %s32 = sphi 0, %s29
      %s33 = sphi 0, %s30
      %s34 = sphi 0, %s31
      %s35 = sphi 0, %s32
      %s36 = sphi 0, %s33
      %s50 = sphi 0, %s52
      %s53 = sphi 0, %s50
      %s54 = sphi 0, %s53
      %s70 = sphi 0, %s54
      %s76 = sphi 0, %s78
      %s79 = sphi 0, %s76
      %s80 = sphi 0, %s79
      %s96 = sphi 0, %s80
      %s106 = sphi 0, %s108
      %s109 = sphi 0, %s106
      %s110 = sphi 0, %s109
      %s126 = sphi 0, %s110
      %s130 = sphi 0, %s130
      %s132 = sphi 0, %s130
      %s133 = sphi 0, %s132
      %s147 = sphi 0, %s133
      %s151 = sphi 0, %s151
      %s153 = sphi 0, %s151
      %s154 = sphi 0, %s153
      %s168 = sphi 0, %s154
      %s176 = sphi 0, %s178
      %s179 = sphi 0, %s176
      %s180 = sphi 0, %s179
      %s196 = sphi 0, %s180
    $region4: #{tpu_custom_call.1} parent=1 // loop_header_branch
      %24 = sbr.rel (%p22) target = $region8
    $region5: #{tpu_custom_call.1} parent=1 // loop_body
      %s26 = ssub.s32 %s21, 1
      %s27 = ssub.s32 %s21, 2
      %s37 = sadd.s32 1, %s30
      %p38 = scmp.ge.s32.totalorder %s37, 1
      %s39 = scalar_select %p38, 0, %s37
      %s40 = sadd.s32 1, %s29
      %s41 = scalar_select %p38, %s40, %s29
      %p42 = scmp.ge.s32.totalorder %s41, 1
      %s43 = scalar_select %p42, 0, %s41
      %s44 = sadd.s32 1, %s28
      %s45 = scalar_select %p42, %s44, %s28
      %p46 = scmp.ge.s32.totalorder %s45, 2
      %s47 = scalar_select %p46, 0, %s45
      %s48 = ssub.s32 %s28, %s47
      %p49 = scmp.eq.s32.totalorder %s48, 0
      %s51 = sadd.s32 %s50, 1
      %s52 = scalar_select %p49, %s50, %s51
      %p55 = pneg %p49
      %p56 = scmp.eq.s32.totalorder %s21, 1
      %p57 = por %p55, %p56
      %p58 = scmp.ne.s32.totalorder %s50, %s53
      %p59 = scmp.eq.s32.totalorder %s21, 0
      %p60 = por %p58, %p59
      %p61 = scmp.ne.s32.totalorder %s50, %s53
      %p62 = scmp.eq.s32.totalorder %s26, 1
      %p63 = por %p61, %p62
      %p64 = scmp.ne.s32.totalorder %s53, %s54
      %p65 = scmp.eq.s32.totalorder %s26, 0
      %p66 = por %p64, %p65
      %p67 = scmp.ne.s32.totalorder %s53, %s54
      %p68 = scmp.eq.s32.totalorder %s27, 1
      %p69 = por %p67, %p68
      %p71 = scmp.ne.s32.totalorder %s54, %s70
      %p72 = scmp.eq.s32.totalorder %s27, 0
      %p73 = por %p71, %p72
      %s74 = ssub.s32 %s28, %s47
      %p75 = scmp.eq.s32.totalorder %s74, 0
      %s77 = sadd.s32 %s76, 1
      %s78 = scalar_select %p75, %s76, %s77
      %p81 = pneg %p75
      %p82 = scmp.eq.s32.totalorder %s21, 1
      %p83 = por %p81, %p82
      %p84 = scmp.ne.s32.totalorder %s76, %s79
      %p85 = scmp.eq.s32.totalorder %s21, 0
      %p86 = por %p84, %p85
      %p87 = scmp.ne.s32.totalorder %s76, %s79
      %p88 = scmp.eq.s32.totalorder %s26, 1
      %p89 = por %p87, %p88
      %p90 = scmp.ne.s32.totalorder %s79, %s80
      %p91 = scmp.eq.s32.totalorder %s26, 0
      %p92 = por %p90, %p91
      %p93 = scmp.ne.s32.totalorder %s79, %s80
      %p94 = scmp.eq.s32.totalorder %s27, 1
      %p95 = por %p93, %p94
      %p97 = scmp.ne.s32.totalorder %s80, %s96
      %p98 = scmp.eq.s32.totalorder %s27, 0
      %p99 = por %p97, %p98
      %s100 = ssub.s32 %s28, %s47
      %s101 = ssub.s32 %s29, %s43
      %s102 = sor.u32 %s100, %s101
      %s103 = ssub.s32 %s30, %s39
      %s104 = sor.u32 %s102, %s103
      %p105 = scmp.eq.s32.totalorder %s104, 0
      %s107 = sadd.s32 %s106, 1
      %s108 = scalar_select %p105, %s106, %s107
      %p111 = pneg %p105
      %p112 = scmp.eq.s32.totalorder %s21, 1
      %p113 = por %p111, %p112
      %p114 = scmp.ne.s32.totalorder %s106, %s109
      %p115 = scmp.eq.s32.totalorder %s21, 0
      %p116 = por %p114, %p115
      %p117 = scmp.ne.s32.totalorder %s106, %s109
      %p118 = scmp.eq.s32.totalorder %s26, 1
      %p119 = por %p117, %p118
      %p120 = scmp.ne.s32.totalorder %s109, %s110
      %p121 = scmp.eq.s32.totalorder %s26, 0
      %p122 = por %p120, %p121
      %p123 = scmp.ne.s32.totalorder %s109, %s110
      %p124 = scmp.eq.s32.totalorder %s27, 1
      %p125 = por %p123, %p124
      %p127 = scmp.ne.s32.totalorder %s110, %s126
      %p128 = scmp.eq.s32.totalorder %s27, 0
      %p129 = por %p127, %p128
      %s131 = sadd.s32 %s130, 1
      %p134 = scmp.eq.s32.totalorder %s21, 1
      %p135 = scmp.ne.s32.totalorder %s130, %s132
      %p136 = scmp.eq.s32.totalorder %s21, 0
      %p137 = por %p135, %p136
      %p138 = scmp.ne.s32.totalorder %s130, %s132
      %p139 = scmp.eq.s32.totalorder %s26, 1
      %p140 = por %p138, %p139
      %p141 = scmp.ne.s32.totalorder %s132, %s133
      %p142 = scmp.eq.s32.totalorder %s26, 0
      %p143 = por %p141, %p142
      %p144 = scmp.ne.s32.totalorder %s132, %s133
      %p145 = scmp.eq.s32.totalorder %s27, 1
      %p146 = por %p144, %p145
      %p148 = scmp.ne.s32.totalorder %s133, %s147
      %p149 = scmp.eq.s32.totalorder %s27, 0
      %p150 = por %p148, %p149
      %s152 = sadd.s32 %s151, 1
      %p155 = scmp.eq.s32.totalorder %s21, 1
      %p156 = scmp.ne.s32.totalorder %s151, %s153
      %p157 = scmp.eq.s32.totalorder %s21, 0
      %p158 = por %p156, %p157
      %p159 = scmp.ne.s32.totalorder %s151, %s153
      %p160 = scmp.eq.s32.totalorder %s26, 1
      %p161 = por %p159, %p160
      %p162 = scmp.ne.s32.totalorder %s153, %s154
      %p163 = scmp.eq.s32.totalorder %s26, 0
      %p164 = por %p162, %p163
      %p165 = scmp.ne.s32.totalorder %s153, %s154
      %p166 = scmp.eq.s32.totalorder %s27, 1
      %p167 = por %p165, %p166
      %p169 = scmp.ne.s32.totalorder %s154, %s168
      %p170 = scmp.eq.s32.totalorder %s27, 0
      %p171 = por %p169, %p170
      %s172 = ssub.s32 %s28, %s47
      %s173 = ssub.s32 %s29, %s43
      %s174 = sor.u32 %s172, %s173
      %p175 = scmp.eq.s32.totalorder %s174, 0
      %s177 = sadd.s32 %s176, 1
      %s178 = scalar_select %p175, %s176, %s177
      %p181 = pneg %p175
      %p182 = scmp.eq.s32.totalorder %s21, 1
      %p183 = por %p181, %p182
      %p184 = scmp.ne.s32.totalorder %s176, %s179
      %p185 = scmp.eq.s32.totalorder %s21, 0
      %p186 = por %p184, %p185
      %p187 = scmp.ne.s32.totalorder %s176, %s179
      %p188 = scmp.eq.s32.totalorder %s26, 1
      %p189 = por %p187, %p188
      %p190 = scmp.ne.s32.totalorder %s179, %s180
      %p191 = scmp.eq.s32.totalorder %s26, 0
      %p192 = por %p190, %p191
      %p193 = scmp.ne.s32.totalorder %s179, %s180
      %p194 = scmp.eq.s32.totalorder %s27, 1
      %p195 = por %p193, %p194
      %p197 = scmp.ne.s32.totalorder %s180, %s196
      %p198 = scmp.eq.s32.totalorder %s27, 0
      %p199 = por %p197, %p198
      %p200 = scmp.le.s32.totalorder 1, %s21
      %p201 = scmp.lt.s32.totalorder %s21, 3
      %p202 = pnand %p200, %p201
      %p203 = pneg %p202
      // Predicated region
      $region9: #{tpu_custom_call.1} parent=5 // pred_check
        _
      $region10: #{tpu_custom_call.1} parent=5 // pred_check_branch
        %205 = sbr.rel (%p202) target = $region12
      $region11: #{tpu_custom_call.1} parent=5 // pred_region
        %s206 = ssub.s32 %s21, 1
        // Predicated region
        $region13: #{tpu_custom_call.1} parent=11 // pred_check
          %p207 = pneg %p143
        $region14: #{tpu_custom_call.1} parent=11 // pred_check_branch
          %209 = sbr.rel (%p207) target = $region16
        $region15: #{tpu_custom_call.1} parent=11 // pred_region
          %s211 = ssub.s32 2048, 2048
          %212 = vsyncadd [#allocation11], %s211
          %s213 = sshll.u32 [#allocation10], 4
          %s214 = int_to_ptr.vmem [resolvable:$true] %s213
          %219 = dma.hbm_to_vmem [thread:$0]  %s3, 2048, %s214, [#allocation11], 128, 128, 8
        $region16: #{tpu_custom_call.1} parent=11 // pred_fallthru
          _
        // Predicated region
        $region17: #{tpu_custom_call.1} parent=11 // pred_check
          %p220 = pneg %p164
        $region18: #{tpu_custom_call.1} parent=11 // pred_check_branch
          %222 = sbr.rel (%p220) target = $region20
        $region19: #{tpu_custom_call.1} parent=11 // pred_region
          _
        $region20: #{tpu_custom_call.1} parent=11 // pred_fallthru
          _
      $region12: #{tpu_custom_call.1} parent=5 // pred_fallthru
        _
      %p223 = scmp.lt.s32.totalorder %s21, 2
      // Predicated region
      $region21: #{tpu_custom_call.1} parent=5 // pred_check
        %p224 = pneg %p223
      $region22: #{tpu_custom_call.1} parent=5 // pred_check_branch
        %226 = sbr.rel (%p224) target = $region24
      $region23: #{tpu_custom_call.1} parent=5 // pred_region
        // Predicated region
        $region25: #{tpu_custom_call.1} parent=23 // pred_check
          %p227 = pneg %p60
        $region26: #{tpu_custom_call.1} parent=23 // pred_check_branch
          %229 = sbr.rel (%p227) target = $region28
        $region27: #{tpu_custom_call.1} parent=23 // pred_region
          %s230 = sand.u32 %s50, 1
          %s231 = scalar_lea.sflag [#allocation5], %s230
          %s232 = sand.u32 %s50, 1
          %s233 = smul.addr %s232, 64
          %s234 = scalar_lea.vmem [#allocation4], %s233
          %s236 = ssub.s32 1024, 1024
          %237 = vsyncadd %s231, %s236
          %s238 = smul.addr %s28, 16
          %s239 = smul.addr %s238, 64
          %s240 = scalar_lea.hbm %s0, %s239
          %s241 = sshll.u32 %s234, 4
          %s242 = int_to_ptr.vmem [resolvable:$true] %s241
          %247 = dma.hbm_to_vmem [thread:$0]  %s240, 1024, %s242, %s231, 64, 64, 4
        $region28: #{tpu_custom_call.1} parent=23 // pred_fallthru
          _
        // Predicated region
        $region29: #{tpu_custom_call.1} parent=23 // pred_check
          %p248 = pneg %p86
        $region30: #{tpu_custom_call.1} parent=23 // pred_check_branch
          %250 = sbr.rel (%p248) target = $region32
        $region31: #{tpu_custom_call.1} parent=23 // pred_region
          %s251 = sand.u32 %s21, 1
          %s252 = scalar_lea.sflag [#allocation8], %s251
          %s253 = sand.u32 %s76, 1
          %s254 = smul.addr %s253, 64
          %s255 = scalar_lea.vmem [#allocation7], %s254
          %s257 = ssub.s32 1024, 1024
          %258 = vsyncadd %s252, %s257
          %s259 = smul.addr %s28, 16
          %s260 = smul.addr %s259, 64
          %s261 = scalar_lea.hbm %s1, %s260
          %s262 = sshll.u32 %s255, 4
          %s263 = int_to_ptr.vmem [resolvable:$true] %s262
          %268 = dma.hbm_to_vmem [thread:$0]  %s261, 1024, %s263, %s252, 64, 64, 4
        $region32: #{tpu_custom_call.1} parent=23 // pred_fallthru
          _
        // Predicated region
        $region33: #{tpu_custom_call.1} parent=23 // pred_check
          %p269 = pneg %p116
        $region34: #{tpu_custom_call.1} parent=23 // pred_check_branch
          %271 = sbr.rel (%p269) target = $region36
        $region35: #{tpu_custom_call.1} parent=23 // pred_region
          %s272 = sand.u32 %s21, 1
          %s273 = scalar_lea.sflag [#allocation8], %s272
          %s274 = sand.u32 %s106, 1
          %s275 = smul.addr %s274, 64
          %s276 = scalar_lea.vmem [#allocation9], %s275
          %s277 = smul.u32 16, %s29
          %s279 = ssub.s32 1024, 1024
          %280 = vsyncadd %s273, %s279
          %s281 = sadd.s32 %s30, %s277
          %s282 = smul.addr %s28, 16
          %s283 = sadd.s32 %s281, %s282
          %s284 = smul.addr %s283, 64
          %s285 = scalar_lea.hbm %s2, %s284
          %s286 = sshll.u32 %s276, 4
          %s287 = int_to_ptr.vmem [resolvable:$true] %s286
          %292 = dma.hbm_to_vmem [thread:$0]  %s285, 1024, %s287, %s273, 64, 64, 4
        $region36: #{tpu_custom_call.1} parent=23 // pred_fallthru
          _
      $region24: #{tpu_custom_call.1} parent=5 // pred_fallthru
        _
      %p293 = scmp.le.s32.totalorder 1, %s21
      %p294 = scmp.lt.s32.totalorder %s21, 3
      %p295 = pnand %p293, %p294
      %p296 = pneg %p295
      // Predicated region
      $region37: #{tpu_custom_call.1} parent=5 // pred_check
        _
      $region38: #{tpu_custom_call.1} parent=5 // pred_check_branch
        %298 = sbr.rel (%p295) target = $region40
      $region39: #{tpu_custom_call.1} parent=5 // pred_region
        %s299 = ssub.s32 %s21, 1
        %s300 = sand.u32 %s53, 1
        %s301 = scalar_lea.sflag [#allocation5], %s300
        %s302 = sand.u32 %s53, 1
        %s303 = smul.addr %s302, 64
        %s304 = scalar_lea.vmem [#allocation4], %s303
        // Predicated region
        $region41: #{tpu_custom_call.1} parent=39 // pred_check
          %p305 = pneg %p66
        $region42: #{tpu_custom_call.1} parent=39 // pred_check_branch
          %307 = sbr.rel (%p305) target = $region44
        $region43: #{tpu_custom_call.1} parent=39 // pred_region
          %308 = dma.done %s301, 1024
        $region44: #{tpu_custom_call.1} parent=39 // pred_fallthru
          _
        %s309 = sand.u32 %s26, 1
        %s310 = scalar_lea.sflag [#allocation8], %s309
        %s311 = sand.u32 %s79, 1
        %s312 = smul.addr %s311, 64
        %s313 = scalar_lea.vmem [#allocation7], %s312
        // Predicated region
        $region45: #{tpu_custom_call.1} parent=39 // pred_check
          %p314 = pneg %p92
        $region46: #{tpu_custom_call.1} parent=39 // pred_check_branch
          %316 = sbr.rel (%p314) target = $region48
        $region47: #{tpu_custom_call.1} parent=39 // pred_region
          %317 = dma.done %s310, 1024
        $region48: #{tpu_custom_call.1} parent=39 // pred_fallthru
          _
        %s318 = sand.u32 %s26, 1
        %s319 = scalar_lea.sflag [#allocation8], %s318
        %s320 = sand.u32 %s109, 1
        %s321 = smul.addr %s320, 64
        %s322 = scalar_lea.vmem [#allocation9], %s321
        // Predicated region
        $region49: #{tpu_custom_call.1} parent=39 // pred_check
          %p323 = pneg %p122
        $region50: #{tpu_custom_call.1} parent=39 // pred_check_branch
          %325 = sbr.rel (%p323) target = $region52
        $region51: #{tpu_custom_call.1} parent=39 // pred_region
          %326 = dma.done %s319, 1024
        $region52: #{tpu_custom_call.1} parent=39 // pred_fallthru
          _
        // Predicated region
        $region53: #{tpu_custom_call.1} parent=39 // pred_check
          %p327 = pneg %p143
        $region54: #{tpu_custom_call.1} parent=39 // pred_check_branch
          %329 = sbr.rel (%p327) target = $region56
        $region55: #{tpu_custom_call.1} parent=39 // pred_region
          %330 = dma.done [#allocation11], 2048
        $region56: #{tpu_custom_call.1} parent=39 // pred_fallthru
          _
        %s331 = sand.u32 %s53, 1
        %s332 = scalar_lea.sflag [#allocation5], %s331
        %s333 = sand.u32 %s53, 1
        %s334 = smul.addr %s333, 64
        %s335 = scalar_lea.vmem [#allocation4], %s334
        %p336 = pneg %p66
        %p337 = pneg %p63
        %s338 = sand.u32 %s26, 1
        %s339 = scalar_lea.sflag [#allocation8], %s338
        %s340 = sand.u32 %s79, 1
        %s341 = smul.addr %s340, 64
        %s342 = scalar_lea.vmem [#allocation7], %s341
        %p343 = pneg %p92
        %p344 = pneg %p89
        %s345 = sand.u32 %s26, 1
        %s346 = scalar_lea.sflag [#allocation8], %s345
        %s347 = sand.u32 %s109, 1
        %s348 = smul.addr %s347, 64
        %s349 = scalar_lea.vmem [#allocation9], %s348
        %p350 = pneg %p122
        %p351 = pneg %p119
        %p352 = pneg %p143
        %p353 = pneg %p140
        %p354 = pneg %p164
        %p355 = pneg %p161
        %p356 = pneg %p192
        %p357 = pneg %p189
        %s358 = sand.u32 %s179, 1
        %s359 = scalar_lea.sflag [#allocation6], %s358
        %s360 = sand.u32 %s179, 1
        %s361 = smul.addr %s360, 128
        %s362 = scalar_lea.vmem [#allocation12], %s361
        %s363 = smul.u32 16, %s32
        %s364 = smul.u32 16, %s32
        %p366 = scmp.eq.s32.totalorder %s33, 0
        // Predicated region
        $region57: #{tpu_custom_call.1} parent=39 // pred_check
          %p367 = pneg %p366
        $region58: #{tpu_custom_call.1} parent=39 // pred_check_branch
          %369 = sbr.rel (%p367) target = $region60
        $region59: #{tpu_custom_call.1} parent=39 // pred_region
          %370 = vst [vmem:[#allocation2] sm:$0xff] 0.0
          %371 = vst [vmem:[#allocation2 + $0x8] sm:$0xff] 0.0
          %372 = vst [vmem:[#allocation2 + $0x10] sm:$0xff] 0.0
          %373 = vst [vmem:[#allocation2 + $0x18] sm:$0xff] 0.0
          %374 = vst [vmem:[#allocation2 + $0x20] sm:$0xff] 0.0
          %375 = vst [vmem:[#allocation2 + $0x28] sm:$0xff] 0.0
          %376 = vst [vmem:[#allocation2 + $0x30] sm:$0xff] 0.0
          %377 = vst [vmem:[#allocation2 + $0x38] sm:$0xff] 0.0
          %378 = vst [vmem:[#allocation2 + $0x40] sm:$0xff] 0.0
          %379 = vst [vmem:[#allocation2 + $0x48] sm:$0xff] 0.0
          %380 = vst [vmem:[#allocation2 + $0x50] sm:$0xff] 0.0
          %381 = vst [vmem:[#allocation2 + $0x58] sm:$0xff] 0.0
          %382 = vst [vmem:[#allocation2 + $0x60] sm:$0xff] 0.0
          %383 = vst [vmem:[#allocation2 + $0x68] sm:$0xff] 0.0
          %384 = vst [vmem:[#allocation2 + $0x70] sm:$0xff] 0.0
          %385 = vst [vmem:[#allocation2 + $0x78] sm:$0xff] 0.0
          %vm386 = vcmask 7168
          %387 = vst.msk [vmem:[#allocation3] sm:$0xff] %vm386, 0.0
          %388 = vst.msk [vmem:[#allocation3 + $0x8] sm:$0xff] %vm386, 0.0
          %389 = vst.msk [vmem:[#allocation3 + $0x10] sm:$0xff] %vm386, 0.0
          %390 = vst.msk [vmem:[#allocation3 + $0x18] sm:$0xff] %vm386, 0.0
          %391 = vst.msk [vmem:[#allocation3 + $0x20] sm:$0xff] %vm386, 0.0
          %392 = vst.msk [vmem:[#allocation3 + $0x28] sm:$0xff] %vm386, 0.0
          %393 = vst.msk [vmem:[#allocation3 + $0x30] sm:$0xff] %vm386, 0.0
          %394 = vst.msk [vmem:[#allocation3 + $0x38] sm:$0xff] %vm386, 0.0
          %395 = vst.msk [vmem:[#allocation3 + $0x40] sm:$0xff] %vm386, 0.0
          %396 = vst.msk [vmem:[#allocation3 + $0x48] sm:$0xff] %vm386, 0.0
          %397 = vst.msk [vmem:[#allocation3 + $0x50] sm:$0xff] %vm386, 0.0
          %398 = vst.msk [vmem:[#allocation3 + $0x58] sm:$0xff] %vm386, 0.0
          %399 = vst.msk [vmem:[#allocation3 + $0x60] sm:$0xff] %vm386, 0.0
          %400 = vst.msk [vmem:[#allocation3 + $0x68] sm:$0xff] %vm386, 0.0
          %401 = vst.msk [vmem:[#allocation3 + $0x70] sm:$0xff] %vm386, 0.0
          %402 = vst.msk [vmem:[#allocation3 + $0x78] sm:$0xff] %vm386, 0.0
        $region60: #{tpu_custom_call.1} parent=39 // pred_fallthru
          _
        %v403 = vld [vmem:[%s322] sm:$0xf]
        %v404 = vld [vmem:[%s322 + $0x4] sm:$0xf]
        %v405 = vld [vmem:[%s322 + $0x8] sm:$0xf]
        %v406 = vld [vmem:[%s322 + $0xc] sm:$0xf]
        %v407 = vld [vmem:[%s322 + $0x10] sm:$0xf]
        %v408 = vld [vmem:[%s322 + $0x14] sm:$0xf]
        %v409 = vld [vmem:[%s322 + $0x18] sm:$0xf]
        %v410 = vld [vmem:[%s322 + $0x1c] sm:$0xf]
        %v411 = vld [vmem:[%s322 + $0x20] sm:$0xf]
        %v412 = vld [vmem:[%s322 + $0x24] sm:$0xf]
        %v413 = vld [vmem:[%s322 + $0x28] sm:$0xf]
        %v414 = vld [vmem:[%s322 + $0x2c] sm:$0xf]
        %v415 = vld [vmem:[%s322 + $0x30] sm:$0xf]
        %v416 = vld [vmem:[%s322 + $0x34] sm:$0xf]
        %v417 = vld [vmem:[%s322 + $0x38] sm:$0xf]
        %v418 = vld [vmem:[%s322 + $0x3c] sm:$0xf]
        %s419 = smul.u32 %s33, 128
        %s420 = sshra.s32 %s419, 3
        %s421 = sand.u32 %s419, 7
        %s422 = smul.addr %s420, 4
        %s423 = scalar_lea.vmem %s304, %s422 [#allocation4]
        %v424 = vld [vmem:[%s423] sm:$0xf]
        %v425 = vld [vmem:[%s423 + $0x4] sm:$0xf]
        %v426 = vld [vmem:[%s423 + $0x8] sm:$0xf]
        %v427 = vld [vmem:[%s423 + $0xc] sm:$0xf]
        %v428 = vld [vmem:[%s423 + $0x10] sm:$0xf]
        %v429 = vld [vmem:[%s423 + $0x14] sm:$0xf]
        %v430 = vld [vmem:[%s423 + $0x18] sm:$0xf]
        %v431 = vld [vmem:[%s423 + $0x1c] sm:$0xf]
        %v432 = vld [vmem:[%s423 + $0x20] sm:$0xf]
        %v433 = vld [vmem:[%s423 + $0x24] sm:$0xf]
        %v434 = vld [vmem:[%s423 + $0x28] sm:$0xf]
        %v435 = vld [vmem:[%s423 + $0x2c] sm:$0xf]
        %v436 = vld [vmem:[%s423 + $0x30] sm:$0xf]
        %v437 = vld [vmem:[%s423 + $0x34] sm:$0xf]
        %v438 = vld [vmem:[%s423 + $0x38] sm:$0xf]
        %v439 = vld [vmem:[%s423 + $0x3c] sm:$0xf]
        %s440 = smul.addr %s420, 4
        %s441 = scalar_lea.vmem %s313, %s440 [#allocation7]
        %v442 = vld [vmem:[%s441] sm:$0xf]
        %v443 = vld [vmem:[%s441 + $0x4] sm:$0xf]
        %v444 = vld [vmem:[%s441 + $0x8] sm:$0xf]
        %v445 = vld [vmem:[%s441 + $0xc] sm:$0xf]
        %v446 = vld [vmem:[%s441 + $0x10] sm:$0xf]
        %v447 = vld [vmem:[%s441 + $0x14] sm:$0xf]
        %v448 = vld [vmem:[%s441 + $0x18] sm:$0xf]
        %v449 = vld [vmem:[%s441 + $0x1c] sm:$0xf]
        %v450 = vld [vmem:[%s441 + $0x20] sm:$0xf]
        %v451 = vld [vmem:[%s441 + $0x24] sm:$0xf]
        %v452 = vld [vmem:[%s441 + $0x28] sm:$0xf]
        %v453 = vld [vmem:[%s441 + $0x2c] sm:$0xf]
        %v454 = vld [vmem:[%s441 + $0x30] sm:$0xf]
        %v455 = vld [vmem:[%s441 + $0x34] sm:$0xf]
        %v456 = vld [vmem:[%s441 + $0x38] sm:$0xf]
        %v457 = vld [vmem:[%s441 + $0x3c] sm:$0xf]
        %v458 = vld [vmem:[#allocation2] sm:$0xff]
        %v459 = vld [vmem:[#allocation2 + $0x8] sm:$0xff]
        %v460 = vld [vmem:[#allocation2 + $0x10] sm:$0xff]
        %v461 = vld [vmem:[#allocation2 + $0x18] sm:$0xff]
        %v462 = vld [vmem:[#allocation2 + $0x20] sm:$0xff]
        %v463 = vld [vmem:[#allocation2 + $0x28] sm:$0xff]
        %v464 = vld [vmem:[#allocation2 + $0x30] sm:$0xff]
        %v465 = vld [vmem:[#allocation2 + $0x38] sm:$0xff]
        %v466 = vld [vmem:[#allocation2 + $0x40] sm:$0xff]
        %v467 = vld [vmem:[#allocation2 + $0x48] sm:$0xff]
        %v468 = vld [vmem:[#allocation2 + $0x50] sm:$0xff]
        %v469 = vld [vmem:[#allocation2 + $0x58] sm:$0xff]
        %v470 = vld [vmem:[#allocation2 + $0x60] sm:$0xff]
        %v471 = vld [vmem:[#allocation2 + $0x68] sm:$0xff]
        %v472 = vld [vmem:[#allocation2 + $0x70] sm:$0xff]
        %v473 = vld [vmem:[#allocation2 + $0x78] sm:$0xff]
        %v490 = vunpack.c.l.b16 %v403
        %v491 = vunpack.c.l.b16 %v404
        %v492 = vunpack.c.l.b16 %v405
        %v493 = vunpack.c.l.b16 %v406
        %v494 = vunpack.c.l.b16 %v407
        %v495 = vunpack.c.l.b16 %v408
        %v496 = vunpack.c.l.b16 %v409
        %v497 = vunpack.c.l.b16 %v410
        %v498 = vunpack.c.l.b16 %v411
        %v499 = vunpack.c.l.b16 %v412
        %v500 = vunpack.c.l.b16 %v413
        %v501 = vunpack.c.l.b16 %v414
        %v502 = vunpack.c.l.b16 %v415
        %v503 = vunpack.c.l.b16 %v416
        %v504 = vunpack.c.l.b16 %v417
        %v505 = vunpack.c.l.b16 %v418
        %v506 = vpack.c.b16 %v491, %v490
        %v507 = vpack.c.b16 %v493, %v492
        %v508 = vpack.c.b16 %v495, %v494
        %v509 = vpack.c.b16 %v497, %v496
        %v510 = vpack.c.b16 %v499, %v498
        %v511 = vpack.c.b16 %v501, %v500
        %v512 = vpack.c.b16 %v503, %v502
        %v513 = vpack.c.b16 %v505, %v504
        %v538 = vunpack.c.l.b16 %v442
        %v539 = vunpack.c.l.b16 %v443
        %v540 = vunpack.c.l.b16 %v444
        %v541 = vunpack.c.l.b16 %v445
        %v542 = vunpack.c.l.b16 %v446
        %v543 = vunpack.c.l.b16 %v447
        %v544 = vunpack.c.l.b16 %v448
        %v545 = vunpack.c.l.b16 %v449
        %v546 = vunpack.c.l.b16 %v450
        %v547 = vunpack.c.l.b16 %v451
        %v548 = vunpack.c.l.b16 %v452
        %v549 = vunpack.c.l.b16 %v453
        %v550 = vunpack.c.l.b16 %v454
        %v551 = vunpack.c.l.b16 %v455
        %v552 = vunpack.c.l.b16 %v456
        %v553 = vunpack.c.l.b16 %v457
        %v554 = vpack.c.b16 %v539, %v538
        %v555 = vpack.c.b16 %v541, %v540
        %v556 = vpack.c.b16 %v543, %v542
        %v557 = vpack.c.b16 %v545, %v544
        %v558 = vpack.c.b16 %v547, %v546
        %v559 = vpack.c.b16 %v549, %v548
        %v560 = vpack.c.b16 %v551, %v550
        %v561 = vpack.c.b16 %v553, %v552
        %570 = vmatprep.subr.bf16.mxu0 0
        %571 = vmatpush1.bf16.msra.mxu0 %v554
        %572 = vmatprep.subr.bf16.mxu0 0
        %573 = vmatpush1.bf16.msra.mxu0 %v555
        %574 = vmatprep.subr.bf16.mxu0 0
        %575 = vmatpush1.bf16.msra.mxu0 %v556
        %576 = vmatprep.subr.bf16.mxu0 0
        %577 = vmatpush1.bf16.msra.mxu0 %v557
        %578 = vmatprep.subr.bf16.mxu0 0
        %579 = vmatpush1.bf16.msra.mxu0 %v558
        %580 = vmatprep.subr.bf16.mxu0 0
        %581 = vmatpush1.bf16.msra.mxu0 %v559
        %582 = vmatprep.subr.bf16.mxu0 0
        %583 = vmatpush1.bf16.msra.mxu0 %v560
        %584 = vmatprep.subr.bf16.mxu0 0
        %585 = vmatpush1.bf16.msra.mxu0 %v561
        %586 = vmatprep.subr.bf16.mxu0 0
        %587 = vmatpush1.bf16.msra.mxu0 0
        %588 = vmatprep.subr.bf16.mxu0 0
        %589 = vmatpush1.bf16.msra.mxu0 0
        %590 = vmatprep.subr.bf16.mxu0 0
        %591 = vmatpush1.bf16.msra.mxu0 0
        %592 = vmatprep.subr.bf16.mxu0 0
        %593 = vmatpush1.bf16.msra.mxu0 0
        %594 = vmatprep.subr.bf16.mxu0 0
        %595 = vmatpush1.bf16.msra.mxu0 0
        %596 = vmatprep.subr.bf16.mxu0 0
        %597 = vmatpush1.bf16.msra.mxu0 0
        %598 = vmatprep.subr.bf16.mxu0 0
        %599 = vmatpush1.bf16.msra.mxu0 0
        %600 = vmatprep.subr.bf16.mxu0 0
        %601 = vmatpush1.bf16.msra.mxu0 0
        %602 = vmatprep.mubr.bf16.mxu0 0
        %603 = vmatmul.mubr.bf16.gmra.mrb[0].mxu0 %v506
        %v604 = vpop.f32.mrb[0].mxu0
        %v605 = vadd.f32 0.0, %v604
        %v606 = vpop.f32.mrb[0].mxu0
        %v607 = vpop.f32.mrb[0].mxu0
        %v608 = vadd.f32 0.0, %v607
        %v609 = vpop.f32.mrb[0].mxu0
        %610 = vmatprep.mubr.bf16.mxu0 0
        %611 = vmatmul.mubr.bf16.gmra.mrb[0].mxu0 %v507
        %v612 = vpop.f32.mrb[0].mxu0
        %v613 = vadd.f32 0.0, %v612
        %v614 = vpop.f32.mrb[0].mxu0
        %v615 = vpop.f32.mrb[0].mxu0
        %v616 = vadd.f32 0.0, %v615
        %v617 = vpop.f32.mrb[0].mxu0
        %618 = vmatprep.mubr.bf16.mxu0 0
        %619 = vmatmul.mubr.bf16.gmra.mrb[0].mxu0 %v508
        %v620 = vpop.f32.mrb[0].mxu0
        %v621 = vadd.f32 0.0, %v620
        %v622 = vpop.f32.mrb[0].mxu0
        %v623 = vpop.f32.mrb[0].mxu0
        %v624 = vadd.f32 0.0, %v623
        %v625 = vpop.f32.mrb[0].mxu0
        %626 = vmatprep.mubr.bf16.mxu0 0
        %627 = vmatmul.mubr.bf16.gmra.mrb[0].mxu0 %v509
        %v628 = vpop.f32.mrb[0].mxu0
        %v629 = vadd.f32 0.0, %v628
        %v630 = vpop.f32.mrb[0].mxu0
        %v631 = vpop.f32.mrb[0].mxu0
        %v632 = vadd.f32 0.0, %v631
        %v633 = vpop.f32.mrb[0].mxu0
        %634 = vmatprep.mubr.bf16.mxu0 0
        %635 = vmatmul.mubr.bf16.gmra.mrb[0].mxu0 %v510
        %v636 = vpop.f32.mrb[0].mxu0
        %v637 = vadd.f32 0.0, %v636
        %v638 = vpop.f32.mrb[0].mxu0
        %v639 = vpop.f32.mrb[0].mxu0
        %v640 = vadd.f32 0.0, %v639
        %v641 = vpop.f32.mrb[0].mxu0
        %642 = vmatprep.mubr.bf16.mxu0 0
        %643 = vmatmul.mubr.bf16.gmra.mrb[0].mxu0 %v511
        %v644 = vpop.f32.mrb[0].mxu0
        %v645 = vadd.f32 0.0, %v644
        %v646 = vpop.f32.mrb[0].mxu0
        %v647 = vpop.f32.mrb[0].mxu0
        %v648 = vadd.f32 0.0, %v647
        %v649 = vpop.f32.mrb[0].mxu0
        %650 = vmatprep.mubr.bf16.mxu0 0
        %651 = vmatmul.mubr.bf16.gmra.mrb[0].mxu0 %v512
        %v652 = vpop.f32.mrb[0].mxu0
        %v653 = vadd.f32 0.0, %v652
        %v654 = vpop.f32.mrb[0].mxu0
        %v655 = vpop.f32.mrb[0].mxu0
        %v656 = vadd.f32 0.0, %v655
        %v657 = vpop.f32.mrb[0].mxu0
        %658 = vmatprep.mubr.bf16.mxu0 0
        %659 = vmatmul.mubr.bf16.gmra.mrb[0].mxu0 %v513
        %v660 = vpop.f32.mrb[0].mxu0
        %v661 = vadd.f32 0.0, %v660
        %v662 = vpop.f32.mrb[0].mxu0
        %v663 = vpop.f32.mrb[0].mxu0
        %v664 = vadd.f32 0.0, %v663
        %v665 = vpop.f32.mrb[0].mxu0
        %666 = vdwg.mxu0
        %v683 = vunpack.c.l.b16 %v424
        %v684 = vunpack.c.l.b16 %v425
        %v685 = vunpack.c.l.b16 %v426
        %v686 = vunpack.c.l.b16 %v427
        %v687 = vunpack.c.l.b16 %v428
        %v688 = vunpack.c.l.b16 %v429
        %v689 = vunpack.c.l.b16 %v430
        %v690 = vunpack.c.l.b16 %v431
        %v691 = vunpack.c.l.b16 %v432
        %v692 = vunpack.c.l.b16 %v433
        %v693 = vunpack.c.l.b16 %v434
        %v694 = vunpack.c.l.b16 %v435
        %v695 = vunpack.c.l.b16 %v436
        %v696 = vunpack.c.l.b16 %v437
        %v697 = vunpack.c.l.b16 %v438
        %v698 = vunpack.c.l.b16 %v439
        %v699 = vpack.c.b16 %v684, %v683
        %v700 = vpack.c.b16 %v686, %v685
        %v701 = vpack.c.b16 %v688, %v687
        %v702 = vpack.c.b16 %v690, %v689
        %v703 = vpack.c.b16 %v692, %v691
        %v704 = vpack.c.b16 %v694, %v693
        %v705 = vpack.c.b16 %v696, %v695
        %v706 = vpack.c.b16 %v698, %v697
        %715 = vmatprep.subr.bf16.mxu0 0
        %716 = vmatpush1.bf16.msra.mxu0 %v699
        %717 = vmatprep.subr.bf16.mxu0 0
        %718 = vmatpush1.bf16.msra.mxu0 %v700
        %719 = vmatprep.subr.bf16.mxu0 0
        %720 = vmatpush1.bf16.msra.mxu0 %v701
        %721 = vmatprep.subr.bf16.mxu0 0
        %722 = vmatpush1.bf16.msra.mxu0 %v702
        %723 = vmatprep.subr.bf16.mxu0 0
        %724 = vmatpush1.bf16.msra.mxu0 %v703
        %725 = vmatprep.subr.bf16.mxu0 0
        %726 = vmatpush1.bf16.msra.mxu0 %v704
        %727 = vmatprep.subr.bf16.mxu0 0
        %728 = vmatpush1.bf16.msra.mxu0 %v705
        %729 = vmatprep.subr.bf16.mxu0 0
        %730 = vmatpush1.bf16.msra.mxu0 %v706
        %731 = vmatprep.subr.bf16.mxu0 0
        %732 = vmatpush1.bf16.msra.mxu0 0
        %733 = vmatprep.subr.bf16.mxu0 0
        %734 = vmatpush1.bf16.msra.mxu0 0
        %735 = vmatprep.subr.bf16.mxu0 0
        %736 = vmatpush1.bf16.msra.mxu0 0
        %737 = vmatprep.subr.bf16.mxu0 0
        %738 = vmatpush1.bf16.msra.mxu0 0
        %739 = vmatprep.subr.bf16.mxu0 0
        %740 = vmatpush1.bf16.msra.mxu0 0
        %741 = vmatprep.subr.bf16.mxu0 0
        %742 = vmatpush1.bf16.msra.mxu0 0
        %743 = vmatprep.subr.bf16.mxu0 0
        %744 = vmatpush1.bf16.msra.mxu0 0
        %745 = vmatprep.subr.bf16.mxu0 0
        %746 = vmatpush1.bf16.msra.mxu0 0
        %747 = vmatprep.mubr.bf16.mxu0 0
        %748 = vmatmul.mubr.bf16.gmra.mrb[0].mxu0 %v506
        %v749 = vpop.f32.mrb[0].mxu0
        %v750 = vadd.f32 %v605, %v749
        %v751 = vpop.f32.mrb[0].mxu0
        %v752 = vpop.f32.mrb[0].mxu0
        %v753 = vadd.f32 %v608, %v752
        %v754 = vpop.f32.mrb[0].mxu0
        %755 = vmatprep.mubr.bf16.mxu0 0
        %756 = vmatmul.mubr.bf16.gmra.mrb[0].mxu0 %v507
        %v757 = vpop.f32.mrb[0].mxu0
        %v758 = vadd.f32 %v613, %v757
        %v759 = vpop.f32.mrb[0].mxu0
        %v760 = vpop.f32.mrb[0].mxu0
        %v761 = vadd.f32 %v616, %v760
        %v762 = vpop.f32.mrb[0].mxu0
        %763 = vmatprep.mubr.bf16.mxu0 0
        %764 = vmatmul.mubr.bf16.gmra.mrb[0].mxu0 %v508
        %v765 = vpop.f32.mrb[0].mxu0
        %v766 = vadd.f32 %v621, %v765
        %v767 = vpop.f32.mrb[0].mxu0
        %v768 = vpop.f32.mrb[0].mxu0
        %v769 = vadd.f32 %v624, %v768
        %v770 = vpop.f32.mrb[0].mxu0
        %771 = vmatprep.mubr.bf16.mxu0 0
        %772 = vmatmul.mubr.bf16.gmra.mrb[0].mxu0 %v509
        %v773 = vpop.f32.mrb[0].mxu0
        %v774 = vadd.f32 %v629, %v773
        %v775 = vpop.f32.mrb[0].mxu0
        %v776 = vpop.f32.mrb[0].mxu0
        %v777 = vadd.f32 %v632, %v776
        %v778 = vpop.f32.mrb[0].mxu0
        %779 = vmatprep.mubr.bf16.mxu0 0
        %780 = vmatmul.mubr.bf16.gmra.mrb[0].mxu0 %v510
        %v781 = vpop.f32.mrb[0].mxu0
        %v782 = vadd.f32 %v637, %v781
        %v783 = vpop.f32.mrb[0].mxu0
        %v784 = vpop.f32.mrb[0].mxu0
        %v785 = vadd.f32 %v640, %v784
        %v786 = vpop.f32.mrb[0].mxu0
        %787 = vmatprep.mubr.bf16.mxu0 0
        %788 = vmatmul.mubr.bf16.gmra.mrb[0].mxu0 %v511
        %v789 = vpop.f32.mrb[0].mxu0
        %v790 = vadd.f32 %v645, %v789
        %v791 = vpop.f32.mrb[0].mxu0
        %v792 = vpop.f32.mrb[0].mxu0
        %v793 = vadd.f32 %v648, %v792
        %v794 = vpop.f32.mrb[0].mxu0
        %795 = vmatprep.mubr.bf16.mxu0 0
        %796 = vmatmul.mubr.bf16.gmra.mrb[0].mxu0 %v512
        %v797 = vpop.f32.mrb[0].mxu0
        %v798 = vadd.f32 %v653, %v797
        %v799 = vpop.f32.mrb[0].mxu0
        %v800 = vpop.f32.mrb[0].mxu0
        %v801 = vadd.f32 %v656, %v800
        %v802 = vpop.f32.mrb[0].mxu0
        %803 = vmatprep.mubr.bf16.mxu0 0
        %804 = vmatmul.mubr.bf16.gmra.mrb[0].mxu0 %v513
        %v805 = vpop.f32.mrb[0].mxu0
        %v806 = vadd.f32 %v661, %v805
        %v807 = vpop.f32.mrb[0].mxu0
        %v808 = vpop.f32.mrb[0].mxu0
        %v809 = vadd.f32 %v664, %v808
        %v810 = vpop.f32.mrb[0].mxu0
        %811 = vdwg.mxu0
        %v812 = vadd.f32 %v458, %v750
        %v813 = vadd.f32 %v459, %v753
        %v814 = vadd.f32 %v460, %v758
        %v815 = vadd.f32 %v461, %v761
        %v816 = vadd.f32 %v462, %v766
        %v817 = vadd.f32 %v463, %v769
        %v818 = vadd.f32 %v464, %v774
        %v819 = vadd.f32 %v465, %v777
        %v820 = vadd.f32 %v466, %v782
        %v821 = vadd.f32 %v467, %v785
        %v822 = vadd.f32 %v468, %v790
        %v823 = vadd.f32 %v469, %v793
        %v824 = vadd.f32 %v470, %v798
        %v825 = vadd.f32 %v471, %v801
        %v826 = vadd.f32 %v472, %v806
        %v827 = vadd.f32 %v473, %v809
        %828 = vst [vmem:[#allocation2] sm:$0xff] %v812
        %829 = vst [vmem:[#allocation2 + $0x8] sm:$0xff] %v813
        %830 = vst [vmem:[#allocation2 + $0x10] sm:$0xff] %v814
        %831 = vst [vmem:[#allocation2 + $0x18] sm:$0xff] %v815
        %832 = vst [vmem:[#allocation2 + $0x20] sm:$0xff] %v816
        %833 = vst [vmem:[#allocation2 + $0x28] sm:$0xff] %v817
        %834 = vst [vmem:[#allocation2 + $0x30] sm:$0xff] %v818
        %835 = vst [vmem:[#allocation2 + $0x38] sm:$0xff] %v819
        %836 = vst [vmem:[#allocation2 + $0x40] sm:$0xff] %v820
        %837 = vst [vmem:[#allocation2 + $0x48] sm:$0xff] %v821
        %838 = vst [vmem:[#allocation2 + $0x50] sm:$0xff] %v822
        %839 = vst [vmem:[#allocation2 + $0x58] sm:$0xff] %v823
        %840 = vst [vmem:[#allocation2 + $0x60] sm:$0xff] %v824
        %841 = vst [vmem:[#allocation2 + $0x68] sm:$0xff] %v825
        %842 = vst [vmem:[#allocation2 + $0x70] sm:$0xff] %v826
        %843 = vst [vmem:[#allocation2 + $0x78] sm:$0xff] %v827
        %v844 = vld [vmem:[#allocation3] sm:$0xff]
        %v845 = vld [vmem:[#allocation3 + $0x8] sm:$0xff]
        %v846 = vld [vmem:[#allocation3 + $0x10] sm:$0xff]
        %v847 = vld [vmem:[#allocation3 + $0x18] sm:$0xff]
        %v848 = vld [vmem:[#allocation3 + $0x20] sm:$0xff]
        %v849 = vld [vmem:[#allocation3 + $0x28] sm:$0xff]
        %v850 = vld [vmem:[#allocation3 + $0x30] sm:$0xff]
        %v851 = vld [vmem:[#allocation3 + $0x38] sm:$0xff]
        %v852 = vld [vmem:[#allocation3 + $0x40] sm:$0xff]
        %v853 = vld [vmem:[#allocation3 + $0x48] sm:$0xff]
        %v854 = vld [vmem:[#allocation3 + $0x50] sm:$0xff]
        %v855 = vld [vmem:[#allocation3 + $0x58] sm:$0xff]
        %v856 = vld [vmem:[#allocation3 + $0x60] sm:$0xff]
        %v857 = vld [vmem:[#allocation3 + $0x68] sm:$0xff]
        %v858 = vld [vmem:[#allocation3 + $0x70] sm:$0xff]
        %v859 = vld [vmem:[#allocation3 + $0x78] sm:$0xff]
        %v860 = vunpack.c.l.bf16 %v403
        %v861 = vunpack.c.l.bf16 %v404
        %v862 = vunpack.c.l.bf16 %v405
        %v863 = vunpack.c.l.bf16 %v406
        %v864 = vunpack.c.l.bf16 %v407
        %v865 = vunpack.c.l.bf16 %v408
        %v866 = vunpack.c.l.bf16 %v409
        %v867 = vunpack.c.l.bf16 %v410
        %v868 = vunpack.c.l.bf16 %v411
        %v869 = vunpack.c.l.bf16 %v412
        %v870 = vunpack.c.l.bf16 %v413
        %v871 = vunpack.c.l.bf16 %v414
        %v872 = vunpack.c.l.bf16 %v415
        %v873 = vunpack.c.l.bf16 %v416
        %v874 = vunpack.c.l.bf16 %v417
        %v875 = vunpack.c.l.bf16 %v418
        %876 = vadd.xlane.f32.xlu0 %v860
        %v877 = vpop.xlane.xlu0 %876
        %878 = vadd.xlane.f32.xlu0 %v861
        %v879 = vpop.xlane.xlu0 %878
        %880 = vadd.xlane.f32.xlu0 %v862
        %v881 = vpop.xlane.xlu0 %880
        %882 = vadd.xlane.f32.xlu0 %v863
        %v883 = vpop.xlane.xlu0 %882
        %884 = vadd.xlane.f32.xlu0 %v864
        %v885 = vpop.xlane.xlu0 %884
        %886 = vadd.xlane.f32.xlu0 %v865
        %v887 = vpop.xlane.xlu0 %886
        %888 = vadd.xlane.f32.xlu0 %v866
        %v889 = vpop.xlane.xlu0 %888
        %890 = vadd.xlane.f32.xlu0 %v867
        %v891 = vpop.xlane.xlu0 %890
        %892 = vadd.xlane.f32.xlu0 %v868
        %v893 = vpop.xlane.xlu0 %892
        %894 = vadd.xlane.f32.xlu0 %v869
        %v895 = vpop.xlane.xlu0 %894
        %896 = vadd.xlane.f32.xlu0 %v870
        %v897 = vpop.xlane.xlu0 %896
        %898 = vadd.xlane.f32.xlu0 %v871
        %v899 = vpop.xlane.xlu0 %898
        %900 = vadd.xlane.f32.xlu0 %v872
        %v901 = vpop.xlane.xlu0 %900
        %902 = vadd.xlane.f32.xlu0 %v873
        %v903 = vpop.xlane.xlu0 %902
        %904 = vadd.xlane.f32.xlu0 %v874
        %v905 = vpop.xlane.xlu0 %904
        %906 = vadd.xlane.f32.xlu0 %v875
        %v907 = vpop.xlane.xlu0 %906
        %v908 = vadd.f32 %v844, %v877
        %v909 = vadd.f32 %v845, %v879
        %v910 = vadd.f32 %v846, %v881
        %v911 = vadd.f32 %v847, %v883
        %v912 = vadd.f32 %v848, %v885
        %v913 = vadd.f32 %v849, %v887
        %v914 = vadd.f32 %v850, %v889
        %v915 = vadd.f32 %v851, %v891
        %v916 = vadd.f32 %v852, %v893
        %v917 = vadd.f32 %v853, %v895
        %v918 = vadd.f32 %v854, %v897
        %v919 = vadd.f32 %v855, %v899
        %v920 = vadd.f32 %v856, %v901
        %v921 = vadd.f32 %v857, %v903
        %v922 = vadd.f32 %v858, %v905
        %v923 = vadd.f32 %v859, %v907
        %vm924 = vcmask 7168
        %925 = vst.msk [vmem:[#allocation3] sm:$0xff] %vm924, %v908
        %926 = vst.msk [vmem:[#allocation3 + $0x8] sm:$0xff] %vm924, %v909
        %927 = vst.msk [vmem:[#allocation3 + $0x10] sm:$0xff] %vm924, %v910
        %928 = vst.msk [vmem:[#allocation3 + $0x18] sm:$0xff] %vm924, %v911
        %929 = vst.msk [vmem:[#allocation3 + $0x20] sm:$0xff] %vm924, %v912
        %930 = vst.msk [vmem:[#allocation3 + $0x28] sm:$0xff] %vm924, %v913
        %931 = vst.msk [vmem:[#allocation3 + $0x30] sm:$0xff] %vm924, %v914
        %932 = vst.msk [vmem:[#allocation3 + $0x38] sm:$0xff] %vm924, %v915
        %933 = vst.msk [vmem:[#allocation3 + $0x40] sm:$0xff] %vm924, %v916
        %934 = vst.msk [vmem:[#allocation3 + $0x48] sm:$0xff] %vm924, %v917
        %935 = vst.msk [vmem:[#allocation3 + $0x50] sm:$0xff] %vm924, %v918
        %936 = vst.msk [vmem:[#allocation3 + $0x58] sm:$0xff] %vm924, %v919
        %937 = vst.msk [vmem:[#allocation3 + $0x60] sm:$0xff] %vm924, %v920
        %938 = vst.msk [vmem:[#allocation3 + $0x68] sm:$0xff] %vm924, %v921
        %939 = vst.msk [vmem:[#allocation3 + $0x70] sm:$0xff] %vm924, %v922
        %940 = vst.msk [vmem:[#allocation3 + $0x78] sm:$0xff] %vm924, %v923
        // Predicated region
        $region61: #{tpu_custom_call.1} parent=39 // pred_check
          %p941 = pneg %p366
        $region62: #{tpu_custom_call.1} parent=39 // pred_check_branch
          %943 = sbr.rel (%p941) target = $region64
        $region63: #{tpu_custom_call.1} parent=39 // pred_region
          %v944 = vld [vmem:[#allocation2] sm:$0xff]
          %v945 = vld [vmem:[#allocation2 + $0x8] sm:$0xff]
          %v946 = vld [vmem:[#allocation2 + $0x10] sm:$0xff]
          %v947 = vld [vmem:[#allocation2 + $0x18] sm:$0xff]
          %v948 = vld [vmem:[#allocation2 + $0x20] sm:$0xff]
          %v949 = vld [vmem:[#allocation2 + $0x28] sm:$0xff]
          %v950 = vld [vmem:[#allocation2 + $0x30] sm:$0xff]
          %v951 = vld [vmem:[#allocation2 + $0x38] sm:$0xff]
          %v952 = vld [vmem:[#allocation2 + $0x40] sm:$0xff]
          %v953 = vld [vmem:[#allocation2 + $0x48] sm:$0xff]
          %v954 = vld [vmem:[#allocation2 + $0x50] sm:$0xff]
          %v955 = vld [vmem:[#allocation2 + $0x58] sm:$0xff]
          %v956 = vld [vmem:[#allocation2 + $0x60] sm:$0xff]
          %v957 = vld [vmem:[#allocation2 + $0x68] sm:$0xff]
          %v958 = vld [vmem:[#allocation2 + $0x70] sm:$0xff]
          %v959 = vld [vmem:[#allocation2 + $0x78] sm:$0xff]
          %v960 = vld [vmem:[#allocation10] sm:$0xff]
          %v961 = vld [vmem:[#allocation10 + $0x8] sm:$0xff]
          %v962 = vld [vmem:[#allocation10 + $0x10] sm:$0xff]
          %v963 = vld [vmem:[#allocation10 + $0x18] sm:$0xff]
          %v964 = vld [vmem:[#allocation10 + $0x20] sm:$0xff]
          %v965 = vld [vmem:[#allocation10 + $0x28] sm:$0xff]
          %v966 = vld [vmem:[#allocation10 + $0x30] sm:$0xff]
          %v967 = vld [vmem:[#allocation10 + $0x38] sm:$0xff]
          %v968 = vld [vmem:[#allocation10 + $0x40] sm:$0xff]
          %v969 = vld [vmem:[#allocation10 + $0x48] sm:$0xff]
          %v970 = vld [vmem:[#allocation10 + $0x50] sm:$0xff]
          %v971 = vld [vmem:[#allocation10 + $0x58] sm:$0xff]
          %v972 = vld [vmem:[#allocation10 + $0x60] sm:$0xff]
          %v973 = vld [vmem:[#allocation10 + $0x68] sm:$0xff]
          %v974 = vld [vmem:[#allocation10 + $0x70] sm:$0xff]
          %v975 = vld [vmem:[#allocation10 + $0x78] sm:$0xff]
          %976 = vmatprep.subr.mxu0 0.0
          %977 = vmatpush1.msra.mxu0 %v960
          %978 = vmatprep.subr.mxu0 0.0
          %979 = vmatpush1.msra.mxu0 %v961
          %980 = vmatprep.subr.mxu0 0.0
          %981 = vmatpush1.msra.mxu0 %v962
          %982 = vmatprep.subr.mxu0 0.0
          %983 = vmatpush1.msra.mxu0 %v963
          %984 = vmatprep.subr.mxu0 0.0
          %985 = vmatpush1.msra.mxu0 %v964
          %986 = vmatprep.subr.mxu0 0.0
          %987 = vmatpush1.msra.mxu0 %v965
          %988 = vmatprep.subr.mxu0 0.0
          %989 = vmatpush1.msra.mxu0 %v966
          %990 = vmatprep.subr.mxu0 0.0
          %991 = vmatpush1.msra.mxu0 %v967
          %992 = vmatprep.subr.mxu0 0.0
          %993 = vmatpush1.msra.mxu0 %v968
          %994 = vmatprep.subr.mxu0 0.0
          %995 = vmatpush1.msra.mxu0 %v969
          %996 = vmatprep.subr.mxu0 0.0
          %997 = vmatpush1.msra.mxu0 %v970
          %998 = vmatprep.subr.mxu0 0.0
          %999 = vmatpush1.msra.mxu0 %v971
          %1000 = vmatprep.subr.mxu0 0.0
          %1001 = vmatpush1.msra.mxu0 %v972
          %1002 = vmatprep.subr.mxu0 0.0
          %1003 = vmatpush1.msra.mxu0 %v973
          %1004 = vmatprep.subr.mxu0 0.0
          %1005 = vmatpush1.msra.mxu0 %v974
          %1006 = vmatprep.subr.mxu0 0.0
          %1007 = vmatpush1.msra.mxu0 %v975
          %1008 = vmatprep.subr.mxu0 0.0
          %1009 = vmatpush1.msra.mxu0 0.0
          %1010 = vmatprep.subr.mxu0 0.0
          %1011 = vmatpush1.msra.mxu0 0.0
          %1012 = vmatprep.subr.mxu0 0.0
          %1013 = vmatpush1.msra.mxu0 0.0
          %1014 = vmatprep.subr.mxu0 0.0
          %1015 = vmatpush1.msra.mxu0 0.0
          %1016 = vmatprep.subr.mxu0 0.0
          %1017 = vmatpush1.msra.mxu0 0.0
          %1018 = vmatprep.subr.mxu0 0.0
          %1019 = vmatpush1.msra.mxu0 0.0
          %1020 = vmatprep.subr.mxu0 0.0
          %1021 = vmatpush1.msra.mxu0 0.0
          %1022 = vmatprep.subr.mxu0 0.0
          %1023 = vmatpush1.msra.mxu0 0.0
          %1024 = vmatprep.subr.mxu0 0.0
          %1025 = vmatpush1.msra.mxu0 0.0
          %1026 = vmatprep.subr.mxu0 0.0
          %1027 = vmatpush1.msra.mxu0 0.0
          %1028 = vmatprep.subr.mxu0 0.0
          %1029 = vmatpush1.msra.mxu0 0.0
          %1030 = vmatprep.subr.mxu0 0.0
          %1031 = vmatpush1.msra.mxu0 0.0
          %1032 = vmatprep.subr.mxu0 0.0
          %1033 = vmatpush1.msra.mxu0 0.0
          %1034 = vmatprep.subr.mxu0 0.0
          %1035 = vmatpush1.msra.mxu0 0.0
          %1036 = vmatprep.subr.mxu0 0.0
          %1037 = vmatpush1.msra.mxu0 0.0
          %1038 = vmatprep.subr.mxu0 0.0
          %1039 = vmatpush1.msra.mxu0 0.0
          %1040 = vmatprep.mubr.f32.mxu0 0.0
          %1041 = vmatmul.mubr.f32.gmra.mrb[0].mxu0 %v944
          %v1042 = vpop.f32.mrb[0].mxu0
          %v1043 = vadd.f32 0.0, %v1042
          %v1044 = vpop.f32.mrb[0].mxu0
          %1045 = vmatprep.mubr.f32.mxu0 0.0
          %1046 = vmatmul.mubr.f32.gmra.mrb[0].mxu0 %v945
          %v1047 = vpop.f32.mrb[0].mxu0
          %v1048 = vadd.f32 0.0, %v1047
          %v1049 = vpop.f32.mrb[0].mxu0
          %1050 = vmatprep.mubr.f32.mxu0 0.0
          %1051 = vmatmul.mubr.f32.gmra.mrb[0].mxu0 %v946
          %v1052 = vpop.f32.mrb[0].mxu0
          %v1053 = vadd.f32 0.0, %v1052
          %v1054 = vpop.f32.mrb[0].mxu0
          %1055 = vmatprep.mubr.f32.mxu0 0.0
          %1056 = vmatmul.mubr.f32.gmra.mrb[0].mxu0 %v947
          %v1057 = vpop.f32.mrb[0].mxu0
          %v1058 = vadd.f32 0.0, %v1057
          %v1059 = vpop.f32.mrb[0].mxu0
          %1060 = vmatprep.mubr.f32.mxu0 0.0
          %1061 = vmatmul.mubr.f32.gmra.mrb[0].mxu0 %v948
          %v1062 = vpop.f32.mrb[0].mxu0
          %v1063 = vadd.f32 0.0, %v1062
          %v1064 = vpop.f32.mrb[0].mxu0
          %1065 = vmatprep.mubr.f32.mxu0 0.0
          %1066 = vmatmul.mubr.f32.gmra.mrb[0].mxu0 %v949
          %v1067 = vpop.f32.mrb[0].mxu0
          %v1068 = vadd.f32 0.0, %v1067
          %v1069 = vpop.f32.mrb[0].mxu0
          %1070 = vmatprep.mubr.f32.mxu0 0.0
          %1071 = vmatmul.mubr.f32.gmra.mrb[0].mxu0 %v950
          %v1072 = vpop.f32.mrb[0].mxu0
          %v1073 = vadd.f32 0.0, %v1072
          %v1074 = vpop.f32.mrb[0].mxu0
          %1075 = vmatprep.mubr.f32.mxu0 0.0
          %1076 = vmatmul.mubr.f32.gmra.mrb[0].mxu0 %v951
          %v1077 = vpop.f32.mrb[0].mxu0
          %v1078 = vadd.f32 0.0, %v1077
          %v1079 = vpop.f32.mrb[0].mxu0
          %1080 = vmatprep.mubr.f32.mxu0 0.0
          %1081 = vmatmul.mubr.f32.gmra.mrb[0].mxu0 %v952
          %v1082 = vpop.f32.mrb[0].mxu0
          %v1083 = vadd.f32 0.0, %v1082
          %v1084 = vpop.f32.mrb[0].mxu0
          %1085 = vmatprep.mubr.f32.mxu0 0.0
          %1086 = vmatmul.mubr.f32.gmra.mrb[0].mxu0 %v953
          %v1087 = vpop.f32.mrb[0].mxu0
          %v1088 = vadd.f32 0.0, %v1087
          %v1089 = vpop.f32.mrb[0].mxu0
          %1090 = vmatprep.mubr.f32.mxu0 0.0
          %1091 = vmatmul.mubr.f32.gmra.mrb[0].mxu0 %v954
          %v1092 = vpop.f32.mrb[0].mxu0
          %v1093 = vadd.f32 0.0, %v1092
          %v1094 = vpop.f32.mrb[0].mxu0
          %1095 = vmatprep.mubr.f32.mxu0 0.0
          %1096 = vmatmul.mubr.f32.gmra.mrb[0].mxu0 %v955
          %v1097 = vpop.f32.mrb[0].mxu0
          %v1098 = vadd.f32 0.0, %v1097
          %v1099 = vpop.f32.mrb[0].mxu0
          %1100 = vmatprep.mubr.f32.mxu0 0.0
          %1101 = vmatmul.mubr.f32.gmra.mrb[0].mxu0 %v956
          %v1102 = vpop.f32.mrb[0].mxu0
          %v1103 = vadd.f32 0.0, %v1102
          %v1104 = vpop.f32.mrb[0].mxu0
          %1105 = vmatprep.mubr.f32.mxu0 0.0
          %1106 = vmatmul.mubr.f32.gmra.mrb[0].mxu0 %v957
          %v1107 = vpop.f32.mrb[0].mxu0
          %v1108 = vadd.f32 0.0, %v1107
          %v1109 = vpop.f32.mrb[0].mxu0
          %1110 = vmatprep.mubr.f32.mxu0 0.0
          %1111 = vmatmul.mubr.f32.gmra.mrb[0].mxu0 %v958
          %v1112 = vpop.f32.mrb[0].mxu0
          %v1113 = vadd.f32 0.0, %v1112
          %v1114 = vpop.f32.mrb[0].mxu0
          %1115 = vmatprep.mubr.f32.mxu0 0.0
          %1116 = vmatmul.mubr.f32.gmra.mrb[0].mxu0 %v959
          %v1117 = vpop.f32.mrb[0].mxu0
          %v1118 = vadd.f32 0.0, %v1117
          %v1119 = vpop.f32.mrb[0].mxu0
          %1120 = vdwg.mxu0
          %v1121 = vld [vmem:[#allocation3] sm:$0xff]
          %v1122 = vld [vmem:[#allocation3 + $0x8] sm:$0xff]
          %v1123 = vld [vmem:[#allocation3 + $0x10] sm:$0xff]
          %v1124 = vld [vmem:[#allocation3 + $0x18] sm:$0xff]
          %v1125 = vld [vmem:[#allocation3 + $0x20] sm:$0xff]
          %v1126 = vld [vmem:[#allocation3 + $0x28] sm:$0xff]
          %v1127 = vld [vmem:[#allocation3 + $0x30] sm:$0xff]
          %v1128 = vld [vmem:[#allocation3 + $0x38] sm:$0xff]
          %v1129 = vld [vmem:[#allocation3 + $0x40] sm:$0xff]
          %v1130 = vld [vmem:[#allocation3 + $0x48] sm:$0xff]
          %v1131 = vld [vmem:[#allocation3 + $0x50] sm:$0xff]
          %v1132 = vld [vmem:[#allocation3 + $0x58] sm:$0xff]
          %v1133 = vld [vmem:[#allocation3 + $0x60] sm:$0xff]
          %v1134 = vld [vmem:[#allocation3 + $0x68] sm:$0xff]
          %v1135 = vld [vmem:[#allocation3 + $0x70] sm:$0xff]
          %v1136 = vld [vmem:[#allocation3 + $0x78] sm:$0xff]
          %v1137 = vrcp.pop %v1121
          %v1138 = vmul.f32 1.0, %v1137
          %v1139 = vrcp.pop %v1122
          %v1140 = vmul.f32 1.0, %v1139
          %v1141 = vrcp.pop %v1123
          %v1142 = vmul.f32 1.0, %v1141
          %v1143 = vrcp.pop %v1124
          %v1144 = vmul.f32 1.0, %v1143
          %v1145 = vrcp.pop %v1125
          %v1146 = vmul.f32 1.0, %v1145
          %v1147 = vrcp.pop %v1126
          %v1148 = vmul.f32 1.0, %v1147
          %v1149 = vrcp.pop %v1127
          %v1150 = vmul.f32 1.0, %v1149
          %v1151 = vrcp.pop %v1128
          %v1152 = vmul.f32 1.0, %v1151
          %v1153 = vrcp.pop %v1129
          %v1154 = vmul.f32 1.0, %v1153
          %v1155 = vrcp.pop %v1130
          %v1156 = vmul.f32 1.0, %v1155
          %v1157 = vrcp.pop %v1131
          %v1158 = vmul.f32 1.0, %v1157
          %v1159 = vrcp.pop %v1132
          %v1160 = vmul.f32 1.0, %v1159
          %v1161 = vrcp.pop %v1133
          %v1162 = vmul.f32 1.0, %v1161
          %v1163 = vrcp.pop %v1134
          %v1164 = vmul.f32 1.0, %v1163
          %v1165 = vrcp.pop %v1135
          %v1166 = vmul.f32 1.0, %v1165
          %v1167 = vrcp.pop %v1136
          %v1168 = vmul.f32 1.0, %v1167
          %1170 = vset.pattern.permute.xlu0 0
          %1171 = vperm.xlu0 %1170, %v1138
          %v1172 = vpop.permute.xlu0 %1171
          %1175 = vset.pattern.permute.xlu0 0
          %1176 = vperm.xlu0 %1175, %v1140
          %v1177 = vpop.permute.xlu0 %1176
          %1180 = vset.pattern.permute.xlu0 0
          %1181 = vperm.xlu0 %1180, %v1142
          %v1182 = vpop.permute.xlu0 %1181
          %1185 = vset.pattern.permute.xlu0 0
          %1186 = vperm.xlu0 %1185, %v1144
          %v1187 = vpop.permute.xlu0 %1186
          %1190 = vset.pattern.permute.xlu0 0
          %1191 = vperm.xlu0 %1190, %v1146
          %v1192 = vpop.permute.xlu0 %1191
          %1195 = vset.pattern.permute.xlu0 0
          %1196 = vperm.xlu0 %1195, %v1148
          %v1197 = vpop.permute.xlu0 %1196
          %1200 = vset.pattern.permute.xlu0 0
          %1201 = vperm.xlu0 %1200, %v1150
          %v1202 = vpop.permute.xlu0 %1201
          %1205 = vset.pattern.permute.xlu0 0
          %1206 = vperm.xlu0 %1205, %v1152
          %v1207 = vpop.permute.xlu0 %1206
          %1210 = vset.pattern.permute.xlu0 0
          %1211 = vperm.xlu0 %1210, %v1154
          %v1212 = vpop.permute.xlu0 %1211
          %1215 = vset.pattern.permute.xlu0 0
          %1216 = vperm.xlu0 %1215, %v1156
          %v1217 = vpop.permute.xlu0 %1216
          %1220 = vset.pattern.permute.xlu0 0
          %1221 = vperm.xlu0 %1220, %v1158
          %v1222 = vpop.permute.xlu0 %1221
          %1225 = vset.pattern.permute.xlu0 0
          %1226 = vperm.xlu0 %1225, %v1160
          %v1227 = vpop.permute.xlu0 %1226
          %1230 = vset.pattern.permute.xlu0 0
          %1231 = vperm.xlu0 %1230, %v1162
          %v1232 = vpop.permute.xlu0 %1231
          %1235 = vset.pattern.permute.xlu0 0
          %1236 = vperm.xlu0 %1235, %v1164
          %v1237 = vpop.permute.xlu0 %1236
          %1240 = vset.pattern.permute.xlu0 0
          %1241 = vperm.xlu0 %1240, %v1166
          %v1242 = vpop.permute.xlu0 %1241
          %1245 = vset.pattern.permute.xlu0 0
          %1246 = vperm.xlu0 %1245, %v1168
          %v1247 = vpop.permute.xlu0 %1246
          %v1249 = vmul.f32 %v1043, %v1172
          %v1250 = vmul.f32 %v1048, %v1177
          %v1251 = vmul.f32 %v1053, %v1182
          %v1252 = vmul.f32 %v1058, %v1187
          %v1253 = vmul.f32 %v1063, %v1192
          %v1254 = vmul.f32 %v1068, %v1197
          %v1255 = vmul.f32 %v1073, %v1202
          %v1256 = vmul.f32 %v1078, %v1207
          %v1257 = vmul.f32 %v1083, %v1212
          %v1258 = vmul.f32 %v1088, %v1217
          %v1259 = vmul.f32 %v1093, %v1222
          %v1260 = vmul.f32 %v1098, %v1227
          %v1261 = vmul.f32 %v1103, %v1232
          %v1262 = vmul.f32 %v1108, %v1237
          %v1263 = vmul.f32 %v1113, %v1242
          %v1264 = vmul.f32 %v1118, %v1247
          %v1265 = vld [vmem:[%s4] sm:$0x1]
          %v1267 = vlaneseq
          %v1268 = vshrl.u32 %v1267, 7
          %v1269 = vsub.s32 0, %v1268
          %v1270 = vrot.slane %v1265, %v1269
          %v1272 = vadd.f32 %v1249, %v1270
          %v1273 = vadd.f32 %v1250, %v1270
          %v1274 = vadd.f32 %v1251, %v1270
          %v1275 = vadd.f32 %v1252, %v1270
          %v1276 = vadd.f32 %v1253, %v1270
          %v1277 = vadd.f32 %v1254, %v1270
          %v1278 = vadd.f32 %v1255, %v1270
          %v1279 = vadd.f32 %v1256, %v1270
          %v1280 = vadd.f32 %v1257, %v1270
          %v1281 = vadd.f32 %v1258, %v1270
          %v1282 = vadd.f32 %v1259, %v1270
          %v1283 = vadd.f32 %v1260, %v1270
          %v1284 = vadd.f32 %v1261, %v1270
          %v1285 = vadd.f32 %v1262, %v1270
          %v1286 = vadd.f32 %v1263, %v1270
          %v1287 = vadd.f32 %v1264, %v1270
          %v1288 = vmul.f32 %v1272, %v1272
          %v1289 = vmul.f32 %v1273, %v1273
          %v1290 = vmul.f32 %v1274, %v1274
          %v1291 = vmul.f32 %v1275, %v1275
          %v1292 = vmul.f32 %v1276, %v1276
          %v1293 = vmul.f32 %v1277, %v1277
          %v1294 = vmul.f32 %v1278, %v1278
          %v1295 = vmul.f32 %v1279, %v1279
          %v1296 = vmul.f32 %v1280, %v1280
          %v1297 = vmul.f32 %v1281, %v1281
          %v1298 = vmul.f32 %v1282, %v1282
          %v1299 = vmul.f32 %v1283, %v1283
          %v1300 = vmul.f32 %v1284, %v1284
          %v1301 = vmul.f32 %v1285, %v1285
          %v1302 = vmul.f32 %v1286, %v1286
          %v1303 = vmul.f32 %v1287, %v1287
          %1304 = vadd.xlane.f32.xlu0 %v1288
          %v1305 = vpop.xlane.xlu0 %1304
          %1306 = vadd.xlane.f32.xlu0 %v1289
          %v1307 = vpop.xlane.xlu0 %1306
          %1308 = vadd.xlane.f32.xlu0 %v1290
          %v1309 = vpop.xlane.xlu0 %1308
          %1310 = vadd.xlane.f32.xlu0 %v1291
          %v1311 = vpop.xlane.xlu0 %1310
          %1312 = vadd.xlane.f32.xlu0 %v1292
          %v1313 = vpop.xlane.xlu0 %1312
          %1314 = vadd.xlane.f32.xlu0 %v1293
          %v1315 = vpop.xlane.xlu0 %1314
          %1316 = vadd.xlane.f32.xlu0 %v1294
          %v1317 = vpop.xlane.xlu0 %1316
          %1318 = vadd.xlane.f32.xlu0 %v1295
          %v1319 = vpop.xlane.xlu0 %1318
          %1320 = vadd.xlane.f32.xlu0 %v1296
          %v1321 = vpop.xlane.xlu0 %1320
          %1322 = vadd.xlane.f32.xlu0 %v1297
          %v1323 = vpop.xlane.xlu0 %1322
          %1324 = vadd.xlane.f32.xlu0 %v1298
          %v1325 = vpop.xlane.xlu0 %1324
          %1326 = vadd.xlane.f32.xlu0 %v1299
          %v1327 = vpop.xlane.xlu0 %1326
          %1328 = vadd.xlane.f32.xlu0 %v1300
          %v1329 = vpop.xlane.xlu0 %1328
          %1330 = vadd.xlane.f32.xlu0 %v1301
          %v1331 = vpop.xlane.xlu0 %1330
          %1332 = vadd.xlane.f32.xlu0 %v1302
          %v1333 = vpop.xlane.xlu0 %1332
          %1334 = vadd.xlane.f32.xlu0 %v1303
          %v1335 = vpop.xlane.xlu0 %1334
          %v1336 = vmax.f32 %v1305, 1e-24
          %v1337 = vmax.f32 %v1307, 1e-24
          %v1338 = vmax.f32 %v1309, 1e-24
          %v1339 = vmax.f32 %v1311, 1e-24
          %v1340 = vmax.f32 %v1313, 1e-24
          %v1341 = vmax.f32 %v1315, 1e-24
          %v1342 = vmax.f32 %v1317, 1e-24
          %v1343 = vmax.f32 %v1319, 1e-24
          %v1344 = vmax.f32 %v1321, 1e-24
          %v1345 = vmax.f32 %v1323, 1e-24
          %v1346 = vmax.f32 %v1325, 1e-24
          %v1347 = vmax.f32 %v1327, 1e-24
          %v1348 = vmax.f32 %v1329, 1e-24
          %v1349 = vmax.f32 %v1331, 1e-24
          %v1350 = vmax.f32 %v1333, 1e-24
          %v1351 = vmax.f32 %v1335, 1e-24
          %v1352 = vrsqrt.pop %v1336
          %v1353 = vrsqrt.pop %v1337
          %v1354 = vrsqrt.pop %v1338
          %v1355 = vrsqrt.pop %v1339
          %v1356 = vrsqrt.pop %v1340
          %v1357 = vrsqrt.pop %v1341
          %v1358 = vrsqrt.pop %v1342
          %v1359 = vrsqrt.pop %v1343
          %v1360 = vrsqrt.pop %v1344
          %v1361 = vrsqrt.pop %v1345
          %v1362 = vrsqrt.pop %v1346
          %v1363 = vrsqrt.pop %v1347
          %v1364 = vrsqrt.pop %v1348
          %v1365 = vrsqrt.pop %v1349
          %v1366 = vrsqrt.pop %v1350
          %v1367 = vrsqrt.pop %v1351
          %v1368 = vmul.f32 %v1272, %v1352
          %v1369 = vmul.f32 %v1273, %v1353
          %v1370 = vmul.f32 %v1274, %v1354
          %v1371 = vmul.f32 %v1275, %v1355
          %v1372 = vmul.f32 %v1276, %v1356
          %v1373 = vmul.f32 %v1277, %v1357
          %v1374 = vmul.f32 %v1278, %v1358
          %v1375 = vmul.f32 %v1279, %v1359
          %v1376 = vmul.f32 %v1280, %v1360
          %v1377 = vmul.f32 %v1281, %v1361
          %v1378 = vmul.f32 %v1282, %v1362
          %v1379 = vmul.f32 %v1283, %v1363
          %v1380 = vmul.f32 %v1284, %v1364
          %v1381 = vmul.f32 %v1285, %v1365
          %v1382 = vmul.f32 %v1286, %v1366
          %v1383 = vmul.f32 %v1287, %v1367
          %1384 = vst [vmem:[%s362] sm:$0xff] %v1368
          %1385 = vst [vmem:[%s362 + $0x8] sm:$0xff] %v1369
          %1386 = vst [vmem:[%s362 + $0x10] sm:$0xff] %v1370
          %1387 = vst [vmem:[%s362 + $0x18] sm:$0xff] %v1371
          %1388 = vst [vmem:[%s362 + $0x20] sm:$0xff] %v1372
          %1389 = vst [vmem:[%s362 + $0x28] sm:$0xff] %v1373
          %1390 = vst [vmem:[%s362 + $0x30] sm:$0xff] %v1374
          %1391 = vst [vmem:[%s362 + $0x38] sm:$0xff] %v1375
          %1392 = vst [vmem:[%s362 + $0x40] sm:$0xff] %v1376
          %1393 = vst [vmem:[%s362 + $0x48] sm:$0xff] %v1377
          %1394 = vst [vmem:[%s362 + $0x50] sm:$0xff] %v1378
          %1395 = vst [vmem:[%s362 + $0x58] sm:$0xff] %v1379
          %1396 = vst [vmem:[%s362 + $0x60] sm:$0xff] %v1380
          %1397 = vst [vmem:[%s362 + $0x68] sm:$0xff] %v1381
          %1398 = vst [vmem:[%s362 + $0x70] sm:$0xff] %v1382
          %1399 = vst [vmem:[%s362 + $0x78] sm:$0xff] %v1383
        $region64: #{tpu_custom_call.1} parent=39 // pred_fallthru
          _
        %s1400 = sand.u32 %s179, 1
        %s1401 = scalar_lea.sflag [#allocation6], %s1400
        %s1402 = sand.u32 %s179, 1
        %s1403 = smul.addr %s1402, 128
        %s1404 = scalar_lea.vmem [#allocation12], %s1403
        // Predicated region
        $region65: #{tpu_custom_call.1} parent=39 // pred_check
          %p1405 = pneg %p189
        $region66: #{tpu_custom_call.1} parent=39 // pred_check_branch
          %1407 = sbr.rel (%p1405) target = $region68
        $region67: #{tpu_custom_call.1} parent=39 // pred_region
          %s1408 = smul.u32 16, %s32
          %s1410 = ssub.s32 2048, 2048
          %1411 = vsyncadd %s1401, %s1410
          %s1412 = smul.addr %s31, 16
          %s1413 = sadd.s32 %s1408, %s1412
          %s1414 = smul.addr %s1413, 128
          %s1415 = scalar_lea.hbm %s5, %s1414
          %s1416 = sshll.u32 %s1404, 4
          %s1417 = int_to_ptr.vmem [resolvable:$true] %s1416
          %1422 = dma.vmem_to_hbm [thread:$0]  %s1417, 2048, %s1415, %s1401, 128, 128, 8
        $region68: #{tpu_custom_call.1} parent=39 // pred_fallthru
          _
      $region40: #{tpu_custom_call.1} parent=5 // pred_fallthru
        _
      %p1423 = scmp.le.s32.totalorder 2, %s21
      // Predicated region
      $region69: #{tpu_custom_call.1} parent=5 // pred_check
        %p1424 = pneg %p1423
      $region70: #{tpu_custom_call.1} parent=5 // pred_check_branch
        %1426 = sbr.rel (%p1424) target = $region72
      $region71: #{tpu_custom_call.1} parent=5 // pred_region
        %s1427 = ssub.s32 %s21, 2
        // Predicated region
        $region73: #{tpu_custom_call.1} parent=71 // pred_check
          %p1428 = pneg %p195
        $region74: #{tpu_custom_call.1} parent=71 // pred_check_branch
          %1430 = sbr.rel (%p1428) target = $region76
        $region75: #{tpu_custom_call.1} parent=71 // pred_region
          %s1431 = sand.u32 %s180, 1
          %s1432 = scalar_lea.sflag [#allocation6], %s1431
          %s1433 = sand.u32 %s180, 1
          %s1434 = smul.addr %s1433, 128
          %s1435 = scalar_lea.vmem [#allocation12], %s1434
          %1436 = dma.done %s1432, 2048
        $region76: #{tpu_custom_call.1} parent=71 // pred_fallthru
          _
      $region72: #{tpu_custom_call.1} parent=5 // pred_fallthru
        _
    $region6: #{tpu_custom_call.1} parent=1 // loop_footer
      %s25 = sadd.s32 1, %s21
    $region7: #{tpu_custom_call.1} parent=1 // loop_footer_branch
      %20 = sbr.rel target = $region3
    $region8: #{tpu_custom_call.1} parent=1 // loop_exit
      _
    %1437 = vsyncpa [#allocation5], 1
    %s1438 = scalar_lea.sflag [#allocation5], 1
    %1439 = vsyncpa %s1438, 1
    %1440 = vsyncpa [#allocation8], 1
    %s1441 = scalar_lea.sflag [#allocation8], 1
    %1442 = vsyncpa %s1441, 1
    %1443 = vsyncpa [#allocation11], 1
    %1444 = vsyncpa [#allocation6], 1
    %s1445 = scalar_lea.sflag [#allocation6], 1
    %1446 = vsyncpa %s1445, 1

</llo_original>
